<compile_context>
chip_gen: v6e
topology: v6e:2x2x1
jax: 0.10.0
libtpu: 0.0.40
codegen_flags: <defaults>
</compile_context>

<pallas_src>
import functools

import jax
import jax.numpy as jnp
from jax import lax
from jax.experimental import pallas as pl
from jax.experimental.pallas import tpu as pltpu

ALPHA = 0.25
GAMMA = 2.0
assert GAMMA == 2.0, "kernel hardcodes (1 - pt)**GAMMA as q*q"

_LANE = 128
_TILE_ALIGN = 256  # keeps the lane-packed loc blocks (TILE_N//32, 128) sublane-aligned
_INPUT_VMEM_BUDGET = 16 * 1024 * 1024  # target for the double-buffered input blocks


def _round_up(a, b):
    return ((a + b - 1) // b) * b


def _num_tensorcores():
    """Best-effort TensorCores per JAX device (megacore chips get a 2-wide axis)."""
    try:
        kind = jax.devices()[0].device_kind.lower()
    except Exception:
        return 2
    if ("v4" in kind) or ("v5p" in kind) or ("7" in kind):
        return 2
    return 1


NUM_CORES = _num_tensorcores()


def _focal_loss_kernel(loc_p_ref, loc_t_ref, loc_m_ref, cls_p_ref, cls_t_ref,
                       out_ref, loc_acc, cls_acc, pos_acc):
    k = pl.program_id(1)

    @pl.when(k == 0)
    def _():
        loc_acc[...] = jnp.zeros_like(loc_acc)
        cls_acc[...] = jnp.zeros_like(cls_acc)
        pos_acc[...] = jnp.zeros_like(pos_acc)

    # ---- localization: smooth L1 (beta=1, sum reduction) over positive anchors.
    # Lane-packed: 32 anchors x 4 coords per 128-lane row; loc_m is the packed
    # positive mask (0/1), so padded / negative anchors contribute exactly 0.
    d = loc_p_ref[...].astype(jnp.float32) - loc_t_ref[...].astype(jnp.float32)
    ad = jnp.abs(d)
    sl1 = jnp.where(ad < 1.0, 0.5 * d * d, ad - 0.5)
    sl1 = sl1 * loc_m_ref[...].astype(jnp.float32)
    loc_acc[...] += jnp.sum(sl1, axis=0, keepdims=True)        # (1, 128)

    # ---- classification: sigmoid focal loss over non-ignored anchors.
    tgt = cls_t_ref[...]                                        # (TILE_N, 1) int32
    unign = (tgt > -1).astype(jnp.float32)                      # non-ignored anchors
    pos = (tgt > 0).astype(jnp.float32)                         # positive anchors

    # one-hot with offset: label 0 -> all zeros, label c>=1 -> one at (c-1)
    x = cls_p_ref[...].astype(jnp.float32)                      # (TILE_N, C) logits
    cls_idx = lax.broadcasted_iota(jnp.int32, x.shape, 1) + 1
    y = (tgt == cls_idx).astype(jnp.float32)                    # (TILE_N, C)

    # Stable, transcendental-lean focal term (one exp + one log per element):
    #   e = exp(-|x|), z = (1-2y)*x  =>  pt = sigmoid(-z)
    #   q  = 1 - pt = sigmoid(z)  = where(z>=0, 1, e) / (1+e)
    #   ce = -log(pt) = softplus(z) = max(z, 0) + log(1+e)
    e = jnp.exp(-jnp.abs(x))
    log1pe = jnp.log(1.0 + e)
    z = (1.0 - 2.0 * y) * x
    q = jnp.where(z >= 0.0, 1.0, e) / (1.0 + e)   # exact recip keeps 1e-5 parity
    ce = jnp.maximum(z, 0.0) + log1pe
    alpha_spec = (1.0 - ALPHA) + (2.0 * ALPHA - 1.0) * y
    fl = alpha_spec * (q * q) * ce * unign                      # GAMMA == 2 -> square
    cls_acc[...] += jnp.sum(fl, axis=0, keepdims=True)          # (1, C)

    # ---- normalizer: number of positive anchors
    pos_acc[...] += jnp.sum(pos, axis=0, keepdims=True)         # (1, 1)

    @pl.when(k == pl.num_programs(1) - 1)
    def _():
        loss_p = jnp.sum(cls_acc[...]) + jnp.sum(loc_acc[...])  # per-core partial
        pos_p = jnp.sum(pos_acc[...])
        sub = lax.broadcasted_iota(jnp.int32, (8, _LANE), 0)
        lane = lax.broadcasted_iota(jnp.int32, (8, _LANE), 1)
        tile = jnp.where((sub == 0) & (lane == 0), loss_p, 0.0)
        tile = tile + jnp.where((sub == 0) & (lane == 1), pos_p, 0.0)
        out_ref[0] = tile


@functools.partial(jax.jit, static_argnames=("num_cls",))
def focal_loss_forward(loc_preds, loc_targets, cls_preds, cls_targets, num_cls):
    """loc_preds/loc_targets: (B, A, 4); cls_preds: (B, A, num_cls);
    cls_targets: (B, A) int labels in {-1 (ignore), 0 (bg), 1..num_cls}."""
    B, A, _ = loc_preds.shape
    N = B * A
    num_cores = NUM_CORES

    loc_p = loc_preds.reshape(N, 4)
    loc_t = loc_targets.reshape(N, 4)
    cls_p = cls_preds.reshape(N, num_cls)
    cls_t = cls_targets.reshape(N, 1).astype(jnp.int32)

    # ---- tile sizing from the total double-buffered VMEM footprint ------------
    cls_bytes = jnp.dtype(cls_preds.dtype).itemsize
    loc_bytes = jnp.dtype(loc_preds.dtype).itemsize
    row_bytes = (
        _round_up(num_cls, _LANE) * cls_bytes   # cls-logit block (lane padded)
        + _LANE * 4                             # int32 label block (lane padded)
        + 2 * 4 * loc_bytes                     # lane-packed loc_p + loc_t (dense)
        + 4 * 2                                 # lane-packed bf16 positive mask
    )
    budget_rows = _INPUT_VMEM_BUDGET // (2 * row_bytes)        # 2x = double buffering
    per_core_rows = _round_up(pl.cdiv(N, num_cores), _TILE_ALIGN)
    tile_n = max(_TILE_ALIGN, min(8192, budget_rows, per_core_rows))
    tile_n -= tile_n % _TILE_ALIGN

    # ---- pad so N is a multiple of num_cores * tile_n.  Padded anchors carry
    # label -1 (ignored) and zero boxes -> exactly zero contribution.
    N_pad = _round_up(N, num_cores * tile_n)
    pad = N_pad - N
    if pad:
        loc_p = jnp.pad(loc_p, ((0, pad), (0, 0)))
        loc_t = jnp.pad(loc_t, ((0, pad), (0, 0)))
        cls_p = jnp.pad(cls_p, ((0, pad), (0, 0)))
        cls_t = jnp.pad(cls_t, ((0, pad), (0, 0)), constant_values=-1)

    # ---- lane-pack the loc path: 32 anchors x 4 coords per 128-lane row -------
    loc_p_pk = loc_p.reshape(N_pad // 32, _LANE)
    loc_t_pk = loc_t.reshape(N_pad // 32, _LANE)
    loc_m_pk = jnp.repeat((cls_t > 0).astype(jnp.bfloat16), 4,
                          axis=1).reshape(N_pad // 32, _LANE)

    n_k = N_pad // (num_cores * tile_n)
    grid = (num_cores, n_k)

    def row_map(c, k):
        return (c * n_k + k, 0)

    vmem_limit = int(max(32 << 20, min(2 * row_bytes * tile_n + (8 << 20), 48 << 20)))

    partials = pl.pallas_call(
        _focal_loss_kernel,
        out_shape=jax.ShapeDtypeStruct((num_cores, 8, _LANE), jnp.float32),
        grid_spec=pltpu.PrefetchScalarGridSpec(
            num_scalar_prefetch=0,
            grid=grid,
            in_specs=[
                pl.BlockSpec((tile_n // 32, _LANE), row_map),   # loc_p (packed)
                pl.BlockSpec((tile_n // 32, _LANE), row_map),   # loc_t (packed)
                pl.BlockSpec((tile_n // 32, _LANE), row_map),   # pos mask (packed)
                pl.BlockSpec((tile_n, num_cls), row_map),       # cls logits
                pl.BlockSpec((tile_n, 1), row_map),             # labels
            ],
            out_specs=pl.BlockSpec((1, 8, _LANE), lambda c, k: (c, 0, 0)),
            scratch_shapes=[
                pltpu.VMEM((1, _LANE), jnp.float32),      # loc partial sums (per lane)
                pltpu.VMEM((1, num_cls), jnp.float32),    # cls partial sums (per class)
                pltpu.VMEM((1, 1), jnp.float32),          # positive-anchor count
            ],
        ),
        compiler_params=pltpu.CompilerParams(
            dimension_semantics=("parallel", "arbitrary"),
            vmem_limit_bytes=vmem_limit,
        ),
    )(loc_p_pk, loc_t_pk, loc_m_pk, cls_p, cls_t)

    loss_sum = jnp.sum(partials[:, 0, 0])
    pos_sum = jnp.sum(partials[:, 0, 1])
    # Matches the PyTorch module exactly: divide by the raw positive count
    # (NaN/inf for zero positives, same as the reference).
    return loss_sum / pos_sum


def _reference(loc_preds, loc_targets, cls_preds, cls_targets, num_cls):
    """Pure-JAX reference mirroring the PyTorch forward."""
    pos = (cls_targets > 0).astype(jnp.float32)[..., None]          # (B, A, 1)
    unign = (cls_targets > -1).astype(jnp.float32)[..., None]       # (B, A, 1)
    d = loc_preds.astype(jnp.float32) - loc_targets.astype(jnp.float32)
    ad = jnp.abs(d)
    sl1 = jnp.where(ad < 1.0, 0.5 * d * d, ad - 0.5)
    loc_loss = jnp.sum(sl1 * pos)

    x = jax.nn.sigmoid(cls_preds.astype(jnp.float32))
    y = jax.nn.one_hot(cls_targets, num_cls + 1)[..., 1:]
    pt = y * x + (1.0 - y) * (1.0 - x)
    alpha_spec = y * ALPHA + (1.0 - y) * (1.0 - ALPHA)
    fl = -alpha_spec * (1.0 - pt) ** GAMMA * jnp.log(pt)
    cls_loss = jnp.sum(fl * unign)
    return (loc_loss + cls_loss) / jnp.sum(pos)


if __name__ == "__main__":
    B, A, NUM_CLS = 2, 16, 8  # 2 images, 16 anchors each, 8 classes

    key = jax.random.PRNGKey(0)
    k1, k2, k3, k4 = jax.random.split(key, 4)
    loc_preds = jax.random.normal(k1, (B, A, 4), dtype=jnp.float32)
    loc_targets = jax.random.normal(k2, (B, A, 4), dtype=jnp.float32)
    cls_preds = jax.random.normal(k3, (B, A, NUM_CLS), dtype=jnp.float32)
    # labels in [-1 .. NUM_CLS]: -1 ignore, 0 background, >0 positive
    cls_targets = jax.random.randint(k4, (B, A), -1, NUM_CLS + 1, dtype=jnp.int32)
    cls_targets = cls_targets.at[0, 0].set(1)  # guarantee >=1 positive anchor

    loss = focal_loss_forward(loc_preds, loc_targets, cls_preds, cls_targets, NUM_CLS)
    loss = jax.block_until_ready(loss)

    ref = _reference(loc_preds, loc_targets, cls_preds, cls_targets, NUM_CLS)
    assert jnp.allclose(loss, ref, rtol=1e-5, atol=1e-5), (loss, ref)

    print("KERNEL_OK")
</pallas_src>

<mosaic_0001>
module attributes {stable_mosaic.version = 11 : i64} {
  func.func @_focal_loss_kernel(%arg0: i32, %arg1: i32, %arg2: memref<8x128xf32, #tpu.memory_space<vmem>>, %arg3: memref<8x128xf32, #tpu.memory_space<vmem>>, %arg4: memref<8x128xbf16, #tpu.memory_space<vmem>>, %arg5: memref<256x8xf32, #tpu.memory_space<vmem>>, %arg6: memref<256x1xi32, #tpu.memory_space<vmem>>, %arg7: memref<1x8x128xf32, #tpu.memory_space<vmem>>, %arg8: memref<1x128xf32, #tpu.memory_space<vmem>>, %arg9: memref<1x8xf32, #tpu.memory_space<vmem>>, %arg10: memref<1x1xf32, #tpu.memory_space<vmem>>) attributes {dimension_semantics = [#tpu.dimension_semantics<parallel>, #tpu.dimension_semantics<arbitrary>], iteration_bounds = array<i64: 1, 1>, scalar_prefetch = 0 : i64, scratch_operands = 3 : i64, tpu.core_type = #tpu.core_type<tc>, window_params = [{transform_indices = @transform_0, window_bounds = array<i64: 8, 128>}, {transform_indices = @transform_1, window_bounds = array<i64: 8, 128>}, {transform_indices = @transform_2, window_bounds = array<i64: 8, 128>}, {transform_indices = @transform_3, window_bounds = array<i64: 256, 8>}, {transform_indices = @transform_4, window_bounds = array<i64: 256, 1>}, {transform_indices = @transform_5, window_bounds = array<i64: 1, 8, 128>}]} {
    %c0_i32 = arith.constant 0 : i32
    %0 = arith.cmpi eq, %arg1, %c0_i32 : i32
    %1 = arith.extui %0 : i1 to i32
    %c0_i32_0 = arith.constant 0 : i32
    %2 = arith.cmpi ne, %1, %c0_i32_0 : i32
    scf.if %2 {
      %cst_40 = arith.constant 0.000000e+00 : f32
      %84 = vector.broadcast %cst_40 : f32 to vector<1x128xf32>
      %c0_41 = arith.constant 0 : index
      %c0_42 = arith.constant 0 : index
      %85 = vector.load %arg8[%c0_41, %c0_42] : memref<1x128xf32, #tpu.memory_space<vmem>>, vector<1x128xf32>
      tpu.vector_store %arg8[%c0_41, %c0_42], %84 {strides = array<i32>} : memref<1x128xf32, #tpu.memory_space<vmem>>, vector<1x128xf32>,
      %cst_43 = arith.constant 0.000000e+00 : f32
      %86 = vector.broadcast %cst_43 : f32 to vector<1x8xf32>
      %c0_44 = arith.constant 0 : index
      %c0_45 = arith.constant 0 : index
      %87 = vector.load %arg9[%c0_44, %c0_45] : memref<1x8xf32, #tpu.memory_space<vmem>>, vector<1x8xf32>
      tpu.vector_store %arg9[%c0_44, %c0_45], %86 {strides = array<i32>} : memref<1x8xf32, #tpu.memory_space<vmem>>, vector<1x8xf32>,
      %cst_46 = arith.constant 0.000000e+00 : f32
      %88 = vector.broadcast %cst_46 : f32 to vector<1x1xf32>
      %c0_47 = arith.constant 0 : index
      %c0_48 = arith.constant 0 : index
      %89 = vector.load %arg10[%c0_47, %c0_48] : memref<1x1xf32, #tpu.memory_space<vmem>>, vector<1x1xf32>
      tpu.vector_store %arg10[%c0_47, %c0_48], %88 {strides = array<i32>} : memref<1x1xf32, #tpu.memory_space<vmem>>, vector<1x1xf32>,
    } else {
    }
    %c0 = arith.constant 0 : index
    %c0_1 = arith.constant 0 : index
    %3 = vector.load %arg2[%c0, %c0_1] : memref<8x128xf32, #tpu.memory_space<vmem>>, vector<8x128xf32>
    %c0_2 = arith.constant 0 : index
    %c0_3 = arith.constant 0 : index
    %4 = vector.load %arg3[%c0_2, %c0_3] : memref<8x128xf32, #tpu.memory_space<vmem>>, vector<8x128xf32>
    %5 = arith.subf %3, %4 : vector<8x128xf32>
    %6 = math.absf %5 : vector<8x128xf32>
    %cst = arith.constant 1.000000e+00 : f32
    %7 = vector.broadcast %cst : f32 to vector<8x128xf32>
    %8 = arith.cmpf olt, %6, %7 : vector<8x128xf32>
    %cst_4 = arith.constant 5.000000e-01 : f32
    %9 = vector.broadcast %cst_4 : f32 to vector<8x128xf32>
    %10 = arith.mulf %9, %5 : vector<8x128xf32>
    %11 = arith.mulf %10, %5 : vector<8x128xf32>
    %cst_5 = arith.constant 5.000000e-01 : f32
    %12 = vector.broadcast %cst_5 : f32 to vector<8x128xf32>
    %13 = arith.subf %6, %12 : vector<8x128xf32>
    %14 = arith.select %8, %11, %13 : vector<8x128xi1>, vector<8x128xf32>
    %c0_6 = arith.constant 0 : index
    %c0_7 = arith.constant 0 : index
    %15 = vector.load %arg4[%c0_6, %c0_7] : memref<8x128xbf16, #tpu.memory_space<vmem>>, vector<8x128xbf16>
    %16 = arith.extf %15 : vector<8x128xbf16> to vector<8x128xf32>
    %17 = arith.mulf %14, %16 : vector<8x128xf32>
    %c0_8 = arith.constant 0 : index
    %c0_9 = arith.constant 0 : index
    %18 = vector.load %arg8[%c0_8, %c0_9] : memref<1x128xf32, #tpu.memory_space<vmem>>, vector<1x128xf32>
    %cst_10 = arith.constant dense<0.000000e+00> : vector<128xf32>
    %19 = vector.multi_reduction <add>, %17, %cst_10 [0] : vector<8x128xf32> to vector<128xf32>
    %20 = vector.shape_cast %19 : vector<128xf32> to vector<1x128xf32>
    %21 = arith.addf %18, %20 : vector<1x128xf32>
    %c0_11 = arith.constant 0 : index
    %c0_12 = arith.constant 0 : index
    %22 = vector.load %arg8[%c0_11, %c0_12] : memref<1x128xf32, #tpu.memory_space<vmem>>, vector<1x128xf32>
    tpu.vector_store %arg8[%c0_11, %c0_12], %21 {strides = array<i32>} : memref<1x128xf32, #tpu.memory_space<vmem>>, vector<1x128xf32>,
    %c0_13 = arith.constant 0 : index
    %c0_14 = arith.constant 0 : index
    %23 = vector.load %arg6[%c0_13, %c0_14] : memref<256x1xi32, #tpu.memory_space<vmem>>, vector<256x1xi32>
    %c-1_i32 = arith.constant -1 : i32
    %24 = vector.broadcast %c-1_i32 : i32 to vector<256x1xi32>
    %25 = arith.cmpi sgt, %23, %24 : vector<256x1xi32>
    %26 = arith.extui %25 : vector<256x1xi1> to vector<256x1xi32>
    %27 = arith.sitofp %26 : vector<256x1xi32> to vector<256x1xf32>
    %c0_i32_15 = arith.constant 0 : i32
    %28 = vector.broadcast %c0_i32_15 : i32 to vector<256x1xi32>
    %29 = arith.cmpi sgt, %23, %28 : vector<256x1xi32>
    %30 = arith.extui %29 : vector<256x1xi1> to vector<256x1xi32>
    %31 = arith.sitofp %30 : vector<256x1xi32> to vector<256x1xf32>
    %c0_16 = arith.constant 0 : index
    %c0_17 = arith.constant 0 : index
    %32 = vector.load %arg5[%c0_16, %c0_17] : memref<256x8xf32, #tpu.memory_space<vmem>>, vector<256x8xf32>
    %33 = tpu.iota {dimensions = array<i32: 1>} : vector<256x8xi32>
    %c1_i32 = arith.constant 1 : i32
    %34 = vector.broadcast %c1_i32 : i32 to vector<256x8xi32>
    %35 = arith.addi %33, %34 : vector<256x8xi32>
    %36 = vector.broadcast %23 : vector<256x1xi32> to vector<256x8xi32>
    %37 = arith.cmpi eq, %36, %35 : vector<256x8xi32>
    %38 = arith.extui %37 : vector<256x8xi1> to vector<256x8xi32>
    %39 = arith.sitofp %38 : vector<256x8xi32> to vector<256x8xf32>
    %40 = math.absf %32 : vector<256x8xf32>
    %cst_18 = arith.constant 0.000000e+00 : f32
    %41 = vector.broadcast %cst_18 : f32 to vector<256x8xf32>
    %42 = arith.subf %41, %40 : vector<256x8xf32>
    %43 = math.exp %42 : vector<256x8xf32>
    %cst_19 = arith.constant 1.000000e+00 : f32
    %44 = vector.broadcast %cst_19 : f32 to vector<256x8xf32>
    %45 = arith.addf %44, %43 : vector<256x8xf32>
    %46 = math.log %45 : vector<256x8xf32>
    %cst_20 = arith.constant 2.000000e+00 : f32
    %47 = vector.broadcast %cst_20 : f32 to vector<256x8xf32>
    %48 = arith.mulf %47, %39 : vector<256x8xf32>
    %cst_21 = arith.constant 1.000000e+00 : f32
    %49 = vector.broadcast %cst_21 : f32 to vector<256x8xf32>
    %50 = arith.subf %49, %48 : vector<256x8xf32>
    %51 = arith.mulf %50, %32 : vector<256x8xf32>
    %cst_22 = arith.constant 0.000000e+00 : f32
    %52 = vector.broadcast %cst_22 : f32 to vector<256x8xf32>
    %53 = arith.cmpf oge, %51, %52 : vector<256x8xf32>
    %cst_23 = arith.constant 1.000000e+00 : f32
    %54 = vector.broadcast %cst_23 : f32 to vector<256x8xf32>
    %55 = arith.select %53, %54, %43 : vector<256x8xi1>, vector<256x8xf32>
    %cst_24 = arith.constant 1.000000e+00 : f32
    %56 = vector.broadcast %cst_24 : f32 to vector<256x8xf32>
    %57 = arith.addf %56, %43 : vector<256x8xf32>
    %58 = arith.divf %55, %57 : vector<256x8xf32>
    %cst_25 = arith.constant 0.000000e+00 : f32
    %59 = vector.broadcast %cst_25 : f32 to vector<256x8xf32>
    %60 = arith.maximumf %51, %59 : vector<256x8xf32>
    %61 = arith.addf %60, %46 : vector<256x8xf32>
    %cst_26 = arith.constant -5.000000e-01 : f32
    %62 = vector.broadcast %cst_26 : f32 to vector<256x8xf32>
    %63 = arith.mulf %62, %39 : vector<256x8xf32>
    %cst_27 = arith.constant 7.500000e-01 : f32
    %64 = vector.broadcast %cst_27 : f32 to vector<256x8xf32>
    %65 = arith.addf %64, %63 : vector<256x8xf32>
    %66 = arith.mulf %58, %58 : vector<256x8xf32>
    %67 = arith.mulf %65, %66 : vector<256x8xf32>
    %68 = arith.mulf %67, %61 : vector<256x8xf32>
    %69 = vector.broadcast %27 : vector<256x1xf32> to vector<256x8xf32>
    %70 = arith.mulf %68, %69 : vector<256x8xf32>
    %c0_28 = arith.constant 0 : index
    %c0_29 = arith.constant 0 : index
    %71 = vector.load %arg9[%c0_28, %c0_29] : memref<1x8xf32, #tpu.memory_space<vmem>>, vector<1x8xf32>
    %cst_30 = arith.constant dense<0.000000e+00> : vector<8xf32>
    %72 = vector.multi_reduction <add>, %70, %cst_30 [0] : vector<256x8xf32> to vector<8xf32>
    %73 = vector.shape_cast %72 : vector<8xf32> to vector<1x8xf32>
    %74 = arith.addf %71, %73 : vector<1x8xf32>
    %c0_31 = arith.constant 0 : index
    %c0_32 = arith.constant 0 : index
    %75 = vector.load %arg9[%c0_31, %c0_32] : memref<1x8xf32, #tpu.memory_space<vmem>>, vector<1x8xf32>
    tpu.vector_store %arg9[%c0_31, %c0_32], %74 {strides = array<i32>} : memref<1x8xf32, #tpu.memory_space<vmem>>, vector<1x8xf32>,
    %c0_33 = arith.constant 0 : index
    %c0_34 = arith.constant 0 : index
    %76 = vector.load %arg10[%c0_33, %c0_34] : memref<1x1xf32, #tpu.memory_space<vmem>>, vector<1x1xf32>
    %cst_35 = arith.constant dense<0.000000e+00> : vector<1xf32>
    %77 = vector.multi_reduction <add>, %31, %cst_35 [0] : vector<256x1xf32> to vector<1xf32>
    %78 = vector.shape_cast %77 : vector<1xf32> to vector<1x1xf32>
    %79 = arith.addf %76, %78 : vector<1x1xf32>
    %c0_36 = arith.constant 0 : index
    %c0_37 = arith.constant 0 : index
    %80 = vector.load %arg10[%c0_36, %c0_37] : memref<1x1xf32, #tpu.memory_space<vmem>>, vector<1x1xf32>
    tpu.vector_store %arg10[%c0_36, %c0_37], %79 {strides = array<i32>} : memref<1x1xf32, #tpu.memory_space<vmem>>, vector<1x1xf32>,
    %c0_i32_38 = arith.constant 0 : i32
    %81 = arith.cmpi eq, %arg1, %c0_i32_38 : i32
    %82 = arith.extui %81 : i1 to i32
    %c0_i32_39 = arith.constant 0 : i32
    %83 = arith.cmpi ne, %82, %c0_i32_39 : i32
    scf.if %83 {
      %c0_40 = arith.constant 0 : index
      %c0_41 = arith.constant 0 : index
      %84 = vector.load %arg9[%c0_40, %c0_41] : memref<1x8xf32, #tpu.memory_space<vmem>>, vector<1x8xf32>
      %85 = vector.shape_cast %84 : vector<1x8xf32> to vector<1x1x8xf32>
      %cst_42 = arith.constant dense<0.000000e+00> : vector<1xf32>
      %86 = vector.multi_reduction <add>, %85, %cst_42 [1, 2] : vector<1x1x8xf32> to vector<1xf32>
      %87 = vector.shape_cast %86 : vector<1xf32> to vector<1x1x1xf32>
      %88 = vector.extract %87[0, 0, 0] : f32 from vector<1x1x1xf32>
      %c0_43 = arith.constant 0 : index
      %c0_44 = arith.constant 0 : index
      %89 = vector.load %arg8[%c0_43, %c0_44] : memref<1x128xf32, #tpu.memory_space<vmem>>, vector<1x128xf32>
      %90 = vector.shape_cast %89 : vector<1x128xf32> to vector<1x1x128xf32>
      %cst_45 = arith.constant dense<0.000000e+00> : vector<1xf32>
      %91 = vector.multi_reduction <add>, %90, %cst_45 [1, 2] : vector<1x1x128xf32> to vector<1xf32>
      %92 = vector.shape_cast %91 : vector<1xf32> to vector<1x1x1xf32>
      %93 = vector.extract %92[0, 0, 0] : f32 from vector<1x1x1xf32>
      %94 = arith.addf %88, %93 : f32
      %c0_46 = arith.constant 0 : index
      %c0_47 = arith.constant 0 : index
      %95 = vector.load %arg10[%c0_46, %c0_47] : memref<1x1xf32, #tpu.memory_space<vmem>>, vector<1x1xf32>
      %96 = vector.shape_cast %95 : vector<1x1xf32> to vector<1x1x1xf32>
      %cst_48 = arith.constant dense<0.000000e+00> : vector<1xf32>
      %97 = vector.multi_reduction <add>, %96, %cst_48 [1, 2] : vector<1x1x1xf32> to vector<1xf32>
      %98 = vector.shape_cast %97 : vector<1xf32> to vector<1x1x1xf32>
      %99 = vector.extract %98[0, 0, 0] : f32 from vector<1x1x1xf32>
      %100 = tpu.iota {dimensions = array<i32: 0>} : vector<8x128xi32>
      %101 = tpu.iota {dimensions = array<i32: 1>} : vector<8x128xi32>
      %c0_i32_49 = arith.constant 0 : i32
      %102 = vector.broadcast %c0_i32_49 : i32 to vector<8x128xi32>
      %103 = arith.cmpi eq, %100, %102 : vector<8x128xi32>
      %c0_i32_50 = arith.constant 0 : i32
      %104 = vector.broadcast %c0_i32_50 : i32 to vector<8x128xi32>
      %105 = arith.cmpi eq, %101, %104 : vector<8x128xi32>
      %106 = arith.andi %103, %105 : vector<8x128xi1>
      %cst_51 = arith.constant 0.000000e+00 : f32
      %107 = vector.broadcast %94 : f32 to vector<8x128xf32>
      %108 = vector.broadcast %cst_51 : f32 to vector<8x128xf32>
      %109 = arith.select %106, %107, %108 : vector<8x128xi1>, vector<8x128xf32>
      %c0_i32_52 = arith.constant 0 : i32
      %110 = vector.broadcast %c0_i32_52 : i32 to vector<8x128xi32>
      %111 = arith.cmpi eq, %100, %110 : vector<8x128xi32>
      %c1_i32_53 = arith.constant 1 : i32
      %112 = vector.broadcast %c1_i32_53 : i32 to vector<8x128xi32>
      %113 = arith.cmpi eq, %101, %112 : vector<8x128xi32>
      %114 = arith.andi %111, %113 : vector<8x128xi1>
      %cst_54 = arith.constant 0.000000e+00 : f32
      %115 = vector.broadcast %99 : f32 to vector<8x128xf32>
      %116 = vector.broadcast %cst_54 : f32 to vector<8x128xf32>
      %117 = arith.select %114, %115, %116 : vector<8x128xi1>, vector<8x128xf32>
      %118 = arith.addf %109, %117 : vector<8x128xf32>
      %c0_55 = arith.constant 0 : index
      %c0_56 = arith.constant 0 : index
      %c0_57 = arith.constant 0 : index
      %119 = vector.load %arg7[%c0_55, %c0_56, %c0_57] : memref<1x8x128xf32, #tpu.memory_space<vmem>>, vector<1x8x128xf32>
      %120 = vector.shape_cast %119 : vector<1x8x128xf32> to vector<8x128xf32>
      %121 = vector.shape_cast %118 : vector<8x128xf32> to vector<1x8x128xf32>
      tpu.vector_store %arg7[%c0_55, %c0_56, %c0_57], %121 {strides = array<i32>} : memref<1x8x128xf32, #tpu.memory_space<vmem>>, vector<1x8x128xf32>,
    } else {
    }
    return
  }
  func.func @transform_0(%arg0: i32, %arg1: i32) -> (i32, i32) {
    %c1_i32 = arith.constant 1 : i32
    %0 = arith.muli %arg0, %c1_i32 : i32
    %1 = arith.addi %0, %arg1 : i32
    %c0_i32 = arith.constant 0 : i32
    %c0_i32_0 = arith.constant 0 : i32
    return %1, %c0_i32 : i32, i32
  }
  func.func @transform_1(%arg0: i32, %arg1: i32) -> (i32, i32) {
    %c1_i32 = arith.constant 1 : i32
    %0 = arith.muli %arg0, %c1_i32 : i32
    %1 = arith.addi %0, %arg1 : i32
    %c0_i32 = arith.constant 0 : i32
    %c0_i32_0 = arith.constant 0 : i32
    return %1, %c0_i32 : i32, i32
  }
  func.func @transform_2(%arg0: i32, %arg1: i32) -> (i32, i32) {
    %c1_i32 = arith.constant 1 : i32
    %0 = arith.muli %arg0, %c1_i32 : i32
    %1 = arith.addi %0, %arg1 : i32
    %c0_i32 = arith.constant 0 : i32
    %c0_i32_0 = arith.constant 0 : i32
    return %1, %c0_i32 : i32, i32
  }
  func.func @transform_3(%arg0: i32, %arg1: i32) -> (i32, i32) {
    %c1_i32 = arith.constant 1 : i32
    %0 = arith.muli %arg0, %c1_i32 : i32
    %1 = arith.addi %0, %arg1 : i32
    %c0_i32 = arith.constant 0 : i32
    %c0_i32_0 = arith.constant 0 : i32
    return %1, %c0_i32 : i32, i32
  }
  func.func @transform_4(%arg0: i32, %arg1: i32) -> (i32, i32) {
    %c1_i32 = arith.constant 1 : i32
    %0 = arith.muli %arg0, %c1_i32 : i32
    %1 = arith.addi %0, %arg1 : i32
    %c0_i32 = arith.constant 0 : i32
    %c0_i32_0 = arith.constant 0 : i32
    return %1, %c0_i32 : i32, i32
  }
  func.func @transform_5(%arg0: i32, %arg1: i32) -> (i32, i32, i32) {
    %c0_i32 = arith.constant 0 : i32
    %c0_i32_0 = arith.constant 0 : i32
    %c0_i32_1 = arith.constant 0 : i32
    return %arg0, %c0_i32, %c0_i32_0 : i32, i32, i32
  }
}

</mosaic_0001>

<llo_original>
// kernel: focal_loss_forward.1
$region0: #{focal_loss_forward.1}
  #allocation0 [shape = 'u32[]', space=smem, size = 0x4, offset = 0x4, fixed_abs, tag = 'smem constant byte address 0x4 - core index']
  #allocation1 [shape = 'u32[144,128]{1,0:T(1,128)}', space=vmem, size = 0x12000, scoped, tag = 'internal scratch']
  #allocation2 [shape = 'f32[1,128]{1,0:T(1,128)}', space=vmem, size = 0x200, scoped, tag = 'scratch operand']
  #allocation3 [shape = 'f32[1,8]{1,0:T(1,128)}', space=vmem, size = 0x200, scoped, tag = 'scratch operand']
  #allocation4 [shape = 'f32[1,1]{1,0:T(1,128)}', space=vmem, size = 0x200, scoped, tag = 'scratch operand']
  %s0 = inlined_call_operand.vmem [shape: f32[8,128], index: 0, kind: input, shape index: {}]
  %s1 = inlined_call_operand.vmem [shape: f32[8,128], index: 1, kind: input, shape index: {}]
  %s2 = inlined_call_operand.vmem [shape: bf16[8,128], index: 2, kind: input, shape index: {}]
  %s3 = inlined_call_operand.vmem [shape: f32[256,8], index: 3, kind: input, shape index: {}]
  %s4 = inlined_call_operand.vmem [shape: s32[256,1], index: 4, kind: input, shape index: {}]
  %s5 = inlined_call_operand.vmem [shape: f32[1,8,128], index: 5, kind: output, shape index: {}]
  %s6 = sld [smem:[#allocation0]]
  $region38: #{focal_loss_forward.1} parent=0
    _
  %s8 = ssub.s32 1, %s6
  %s9 = scalar_select 0, %s8, %s6
  // Predicated region
  $region2: #{focal_loss_forward.1} parent=0 // pred_check
    _
  $region3: #{focal_loss_forward.1} parent=0 // pred_check_branch
    %11 = sbr.rel (0) target = $region5
  $region4: #{focal_loss_forward.1} parent=0 // pred_region
    %s12 = sadd.s32 0, 0
    %p13 = scmp.lt.s32.totalorder %s12, 0
    %s14 = scalar_select %p13, %s12, 0
    %s15 = smul.addr %s14, 8
    %s16 = scalar_lea.vmem %s0, %s15
    %s17 = sadd.s32 0, 0
  $region5: #{focal_loss_forward.1} parent=0 // pred_fallthru
    _
  // Predicated region
  $region6: #{focal_loss_forward.1} parent=0 // pred_check
    _
  $region7: #{focal_loss_forward.1} parent=0 // pred_check_branch
    %19 = sbr.rel (0) target = $region9
  $region8: #{focal_loss_forward.1} parent=0 // pred_region
    %s20 = sadd.s32 0, 0
    %p21 = scmp.lt.s32.totalorder %s20, 0
    %s22 = scalar_select %p21, %s20, 0
    %s23 = smul.addr %s22, 8
    %s24 = scalar_lea.vmem %s1, %s23
    %s25 = sadd.s32 0, 0
  $region9: #{focal_loss_forward.1} parent=0 // pred_fallthru
    _
  // Predicated region
  $region10: #{focal_loss_forward.1} parent=0 // pred_check
    _
  $region11: #{focal_loss_forward.1} parent=0 // pred_check_branch
    %27 = sbr.rel (0) target = $region13
  $region12: #{focal_loss_forward.1} parent=0 // pred_region
    %s28 = sadd.s32 0, 0
    %p29 = scmp.lt.s32.totalorder %s28, 0
    %s30 = scalar_select %p29, %s28, 0
    %s31 = smul.addr %s30, 4
    %s32 = scalar_lea.vmem %s2, %s31
    %s33 = sadd.s32 0, 0
  $region13: #{focal_loss_forward.1} parent=0 // pred_fallthru
    _
  // Predicated region
  $region14: #{focal_loss_forward.1} parent=0 // pred_check
    _
  $region15: #{focal_loss_forward.1} parent=0 // pred_check_branch
    %35 = sbr.rel (0) target = $region17
  $region16: #{focal_loss_forward.1} parent=0 // pred_region
    %s36 = sadd.s32 0, 0
    %s37 = smul.u32 32, %s36
    %p38 = scmp.lt.s32.totalorder %s37, 31
    %s39 = scalar_select %p38, %s37, 31
    %s40 = smul.addr %s39, 8
    %s41 = scalar_lea.vmem %s3, %s40
    %s42 = sadd.s32 0, 0
    %s43 = smul.u32 32, %s42
  $region17: #{focal_loss_forward.1} parent=0 // pred_fallthru
    _
  // Predicated region
  $region18: #{focal_loss_forward.1} parent=0 // pred_check
    _
  $region19: #{focal_loss_forward.1} parent=0 // pred_check_branch
    %45 = sbr.rel (0) target = $region21
  $region20: #{focal_loss_forward.1} parent=0 // pred_region
    %s46 = sadd.s32 0, 0
    %s47 = smul.u32 32, %s46
    %p48 = scmp.lt.s32.totalorder %s47, 31
    %s49 = scalar_select %p48, %s47, 31
    %s50 = smul.addr %s49, 8
    %s51 = scalar_lea.vmem %s4, %s50
    %s52 = sadd.s32 0, 0
    %s53 = smul.u32 32, %s52
  $region21: #{focal_loss_forward.1} parent=0 // pred_fallthru
    _
  %s54 = sadd.s32 0, 0
  %p55 = scmp.lt.s32.totalorder %s54, 0
  %s56 = scalar_select %p55, %s54, 0
  %s57 = smul.addr %s56, 8
  %s58 = scalar_lea.vmem %s0, %s57
  %s59 = sadd.s32 0, 0
  %p60 = scmp.lt.s32.totalorder %s59, 0
  %s61 = scalar_select %p60, %s59, 0
  %s62 = smul.addr %s61, 8
  %s63 = scalar_lea.vmem %s1, %s62
  %s64 = sadd.s32 0, 0
  %p65 = scmp.lt.s32.totalorder %s64, 0
  %s66 = scalar_select %p65, %s64, 0
  %s67 = smul.addr %s66, 4
  %s68 = scalar_lea.vmem %s2, %s67
  %s69 = sadd.s32 0, 0
  %s70 = smul.u32 32, %s69
  %p71 = scmp.lt.s32.totalorder %s70, 31
  %s72 = scalar_select %p71, %s70, 31
  %s73 = smul.addr %s72, 8
  %s74 = scalar_lea.vmem %s3, %s73
  %s75 = sadd.s32 0, 0
  %s76 = smul.u32 32, %s75
  %p77 = scmp.lt.s32.totalorder %s76, 31
  %s78 = scalar_select %p77, %s76, 31
  %s79 = smul.addr %s78, 8
  %s80 = scalar_lea.vmem %s4, %s79
  %s81 = sadd.s32 0, 0
  %p82 = scmp.lt.s32.totalorder %s81, 0
  %s83 = scalar_select %p82, %s81, 0
  %s84 = smul.addr %s83, 8
  %s85 = scalar_lea.vmem %s0, %s84
  %s86 = sadd.s32 0, 0
  %s87 = sadd.s32 0, 0
  %p88 = scmp.lt.s32.totalorder %s87, 0
  %s89 = scalar_select %p88, %s87, 0
  %s90 = smul.addr %s89, 8
  %s91 = scalar_lea.vmem %s1, %s90
  %s92 = sadd.s32 0, 0
  %s93 = sadd.s32 0, 0
  %p94 = scmp.lt.s32.totalorder %s93, 0
  %s95 = scalar_select %p94, %s93, 0
  %s96 = smul.addr %s95, 4
  %s97 = scalar_lea.vmem %s2, %s96
  %s98 = sadd.s32 0, 0
  %s99 = sadd.s32 0, 0
  %s100 = smul.u32 32, %s99
  %p101 = scmp.lt.s32.totalorder %s100, 31
  %s102 = scalar_select %p101, %s100, 31
  %s103 = smul.addr %s102, 8
  %s104 = scalar_lea.vmem %s3, %s103
  %s105 = sadd.s32 0, 0
  %s106 = smul.u32 32, %s105
  %s107 = sadd.s32 0, 0
  %s108 = smul.u32 32, %s107
  %p109 = scmp.lt.s32.totalorder %s108, 31
  %s110 = scalar_select %p109, %s108, 31
  %s111 = smul.addr %s110, 8
  %s112 = scalar_lea.vmem %s4, %s111
  %s113 = sadd.s32 0, 0
  %s114 = smul.u32 32, %s113
  %p115 = scmp.eq.s32.totalorder 0, 0
  // Predicated region
  $region22: #{focal_loss_forward.1} parent=0 // pred_check
    %p116 = pneg %p115
  $region23: #{focal_loss_forward.1} parent=0 // pred_check_branch
    %118 = sbr.rel (%p116) target = $region25
  $region24: #{focal_loss_forward.1} parent=0 // pred_region
    %119 = vst [vmem:[#allocation2] sm:$0x1] 0.0
    %vm120 = vcmask 57344
    %121 = vst.msk [vmem:[#allocation3] sm:$0x1] %vm120, 0.0
    %vm122 = vcmask 0
    %123 = vst.msk [vmem:[#allocation4] sm:$0x1] %vm122, 0.0
  $region25: #{focal_loss_forward.1} parent=0 // pred_fallthru
    _
  %v124 = vld [vmem:[%s85] sm:$0xff]
  %v125 = vld [vmem:[%s91] sm:$0xff]
  %v126 = vsub.f32 %v124, %v125
  %v127 = vand.u32 2147483647, %v126
  %vm128 = vcmp.lt.f32.partialorder %v127, 1.0
  %v129 = vmul.f32 %v126, 0.5
  %v130 = vmul.f32 %v129, %v126
  %v131 = vsub.f32 %v127, 0.5
  %v132 = vsel %vm128, %v130, %v131
  %v133 = vld [vmem:[%s97] sm:$0xf]
  %v134 = vunpack.c.l.bf16 %v133
  %v135 = vmul.f32 %v132, %v134
  %v136 = vld [vmem:[#allocation2] sm:$0x1]
  %v137 = vrot.slane %v135, 4
  %v138 = vadd.f32 %v135, %v137
  %v139 = vrot.slane %v138, 2
  %v140 = vadd.f32 %v138, %v139
  %v141 = vrot.slane %v140, 1
  %v142 = vadd.f32 %v140, %v141
  %v143 = vadd.f32 %v136, %v142
  %144 = vst [vmem:[#allocation2] sm:$0x1] %v143
  %v145 = vld [vmem:[%s112] sm:$0xff]
  %v146 = vld [vmem:[%s112 + $0x8] sm:$0xff]
  %v147 = vld [vmem:[%s112 + $0x10] sm:$0xff]
  %v148 = vld [vmem:[%s112 + $0x18] sm:$0xff]
  %v149 = vld [vmem:[%s112 + $0x20] sm:$0xff]
  %v150 = vld [vmem:[%s112 + $0x28] sm:$0xff]
  %v151 = vld [vmem:[%s112 + $0x30] sm:$0xff]
  %v152 = vld [vmem:[%s112 + $0x38] sm:$0xff]
  %v153 = vld [vmem:[%s112 + $0x40] sm:$0xff]
  %v154 = vld [vmem:[%s112 + $0x48] sm:$0xff]
  %v155 = vld [vmem:[%s112 + $0x50] sm:$0xff]
  %v156 = vld [vmem:[%s112 + $0x58] sm:$0xff]
  %v157 = vld [vmem:[%s112 + $0x60] sm:$0xff]
  %v158 = vld [vmem:[%s112 + $0x68] sm:$0xff]
  %v159 = vld [vmem:[%s112 + $0x70] sm:$0xff]
  %v160 = vld [vmem:[%s112 + $0x78] sm:$0xff]
  %v161 = vld [vmem:[%s112 + $0x80] sm:$0xff]
  %v162 = vld [vmem:[%s112 + $0x88] sm:$0xff]
  %v163 = vld [vmem:[%s112 + $0x90] sm:$0xff]
  %v164 = vld [vmem:[%s112 + $0x98] sm:$0xff]
  %v165 = vld [vmem:[%s112 + $0xa0] sm:$0xff]
  %v166 = vld [vmem:[%s112 + $0xa8] sm:$0xff]
  %v167 = vld [vmem:[%s112 + $0xb0] sm:$0xff]
  %v168 = vld [vmem:[%s112 + $0xb8] sm:$0xff]
  %v169 = vld [vmem:[%s112 + $0xc0] sm:$0xff]
  %v170 = vld [vmem:[%s112 + $0xc8] sm:$0xff]
  %v171 = vld [vmem:[%s112 + $0xd0] sm:$0xff]
  %v172 = vld [vmem:[%s112 + $0xd8] sm:$0xff]
  %v173 = vld [vmem:[%s112 + $0xe0] sm:$0xff]
  %v174 = vld [vmem:[%s112 + $0xe8] sm:$0xff]
  %v175 = vld [vmem:[%s112 + $0xf0] sm:$0xff]
  %v176 = vld [vmem:[%s112 + $0xf8] sm:$0xff]
  %vm177 = vcmp.gt.s32.totalorder %v145, 4294967295
  %vm178 = vcmp.gt.s32.totalorder %v146, 4294967295
  %vm179 = vcmp.gt.s32.totalorder %v147, 4294967295
  %vm180 = vcmp.gt.s32.totalorder %v148, 4294967295
  %vm181 = vcmp.gt.s32.totalorder %v149, 4294967295
  %vm182 = vcmp.gt.s32.totalorder %v150, 4294967295
  %vm183 = vcmp.gt.s32.totalorder %v151, 4294967295
  %vm184 = vcmp.gt.s32.totalorder %v152, 4294967295
  %vm185 = vcmp.gt.s32.totalorder %v153, 4294967295
  %vm186 = vcmp.gt.s32.totalorder %v154, 4294967295
  %vm187 = vcmp.gt.s32.totalorder %v155, 4294967295
  %vm188 = vcmp.gt.s32.totalorder %v156, 4294967295
  %vm189 = vcmp.gt.s32.totalorder %v157, 4294967295
  %vm190 = vcmp.gt.s32.totalorder %v158, 4294967295
  %vm191 = vcmp.gt.s32.totalorder %v159, 4294967295
  %vm192 = vcmp.gt.s32.totalorder %v160, 4294967295
  %vm193 = vcmp.gt.s32.totalorder %v161, 4294967295
  %vm194 = vcmp.gt.s32.totalorder %v162, 4294967295
  %vm195 = vcmp.gt.s32.totalorder %v163, 4294967295
  %vm196 = vcmp.gt.s32.totalorder %v164, 4294967295
  %vm197 = vcmp.gt.s32.totalorder %v165, 4294967295
  %vm198 = vcmp.gt.s32.totalorder %v166, 4294967295
  %vm199 = vcmp.gt.s32.totalorder %v167, 4294967295
  %vm200 = vcmp.gt.s32.totalorder %v168, 4294967295
  %vm201 = vcmp.gt.s32.totalorder %v169, 4294967295
  %vm202 = vcmp.gt.s32.totalorder %v170, 4294967295
  %vm203 = vcmp.gt.s32.totalorder %v171, 4294967295
  %vm204 = vcmp.gt.s32.totalorder %v172, 4294967295
  %vm205 = vcmp.gt.s32.totalorder %v173, 4294967295
  %vm206 = vcmp.gt.s32.totalorder %v174, 4294967295
  %vm207 = vcmp.gt.s32.totalorder %v175, 4294967295
  %vm208 = vcmp.gt.s32.totalorder %v176, 4294967295
  %v209 = vsel %vm177, 1, 0
  %v210 = vsel %vm178, 1, 0
  %v211 = vsel %vm179, 1, 0
  %v212 = vsel %vm180, 1, 0
  %v213 = vsel %vm181, 1, 0
  %v214 = vsel %vm182, 1, 0
  %v215 = vsel %vm183, 1, 0
  %v216 = vsel %vm184, 1, 0
  %v217 = vsel %vm185, 1, 0
  %v218 = vsel %vm186, 1, 0
  %v219 = vsel %vm187, 1, 0
  %v220 = vsel %vm188, 1, 0
  %v221 = vsel %vm189, 1, 0
  %v222 = vsel %vm190, 1, 0
  %v223 = vsel %vm191, 1, 0
  %v224 = vsel %vm192, 1, 0
  %v225 = vsel %vm193, 1, 0
  %v226 = vsel %vm194, 1, 0
  %v227 = vsel %vm195, 1, 0
  %v228 = vsel %vm196, 1, 0
  %v229 = vsel %vm197, 1, 0
  %v230 = vsel %vm198, 1, 0
  %v231 = vsel %vm199, 1, 0
  %v232 = vsel %vm200, 1, 0
  %v233 = vsel %vm201, 1, 0
  %v234 = vsel %vm202, 1, 0
  %v235 = vsel %vm203, 1, 0
  %v236 = vsel %vm204, 1, 0
  %v237 = vsel %vm205, 1, 0
  %v238 = vsel %vm206, 1, 0
  %v239 = vsel %vm207, 1, 0
  %v240 = vsel %vm208, 1, 0
  %v241 = vcvt.s32.f32 %v209
  %v242 = vcvt.s32.f32 %v210
  %v243 = vcvt.s32.f32 %v211
  %v244 = vcvt.s32.f32 %v212
  %v245 = vcvt.s32.f32 %v213
  %v246 = vcvt.s32.f32 %v214
  %v247 = vcvt.s32.f32 %v215
  %v248 = vcvt.s32.f32 %v216
  %v249 = vcvt.s32.f32 %v217
  %v250 = vcvt.s32.f32 %v218
  %v251 = vcvt.s32.f32 %v219
  %v252 = vcvt.s32.f32 %v220
  %v253 = vcvt.s32.f32 %v221
  %v254 = vcvt.s32.f32 %v222
  %v255 = vcvt.s32.f32 %v223
  %v256 = vcvt.s32.f32 %v224
  %v257 = vcvt.s32.f32 %v225
  %v258 = vcvt.s32.f32 %v226
  %v259 = vcvt.s32.f32 %v227
  %v260 = vcvt.s32.f32 %v228
  %v261 = vcvt.s32.f32 %v229
  %v262 = vcvt.s32.f32 %v230
  %v263 = vcvt.s32.f32 %v231
  %v264 = vcvt.s32.f32 %v232
  %v265 = vcvt.s32.f32 %v233
  %v266 = vcvt.s32.f32 %v234
  %v267 = vcvt.s32.f32 %v235
  %v268 = vcvt.s32.f32 %v236
  %v269 = vcvt.s32.f32 %v237
  %v270 = vcvt.s32.f32 %v238
  %v271 = vcvt.s32.f32 %v239
  %v272 = vcvt.s32.f32 %v240
  %vm273 = vcmp.gt.s32.totalorder %v145, 0
  %vm274 = vcmp.gt.s32.totalorder %v146, 0
  %vm275 = vcmp.gt.s32.totalorder %v147, 0
  %vm276 = vcmp.gt.s32.totalorder %v148, 0
  %vm277 = vcmp.gt.s32.totalorder %v149, 0
  %vm278 = vcmp.gt.s32.totalorder %v150, 0
  %vm279 = vcmp.gt.s32.totalorder %v151, 0
  %vm280 = vcmp.gt.s32.totalorder %v152, 0
  %vm281 = vcmp.gt.s32.totalorder %v153, 0
  %vm282 = vcmp.gt.s32.totalorder %v154, 0
  %vm283 = vcmp.gt.s32.totalorder %v155, 0
  %vm284 = vcmp.gt.s32.totalorder %v156, 0
  %vm285 = vcmp.gt.s32.totalorder %v157, 0
  %vm286 = vcmp.gt.s32.totalorder %v158, 0
  %vm287 = vcmp.gt.s32.totalorder %v159, 0
  %vm288 = vcmp.gt.s32.totalorder %v160, 0
  %vm289 = vcmp.gt.s32.totalorder %v161, 0
  %vm290 = vcmp.gt.s32.totalorder %v162, 0
  %vm291 = vcmp.gt.s32.totalorder %v163, 0
  %vm292 = vcmp.gt.s32.totalorder %v164, 0
  %vm293 = vcmp.gt.s32.totalorder %v165, 0
  %vm294 = vcmp.gt.s32.totalorder %v166, 0
  %vm295 = vcmp.gt.s32.totalorder %v167, 0
  %vm296 = vcmp.gt.s32.totalorder %v168, 0
  %vm297 = vcmp.gt.s32.totalorder %v169, 0
  %vm298 = vcmp.gt.s32.totalorder %v170, 0
  %vm299 = vcmp.gt.s32.totalorder %v171, 0
  %vm300 = vcmp.gt.s32.totalorder %v172, 0
  %vm301 = vcmp.gt.s32.totalorder %v173, 0
  %vm302 = vcmp.gt.s32.totalorder %v174, 0
  %vm303 = vcmp.gt.s32.totalorder %v175, 0
  %vm304 = vcmp.gt.s32.totalorder %v176, 0
  %v305 = vsel %vm273, 1, 0
  %v306 = vsel %vm274, 1, 0
  %v307 = vsel %vm275, 1, 0
  %v308 = vsel %vm276, 1, 0
  %v309 = vsel %vm277, 1, 0
  %v310 = vsel %vm278, 1, 0
  %v311 = vsel %vm279, 1, 0
  %v312 = vsel %vm280, 1, 0
  %v313 = vsel %vm281, 1, 0
  %v314 = vsel %vm282, 1, 0
  %v315 = vsel %vm283, 1, 0
  %v316 = vsel %vm284, 1, 0
  %v317 = vsel %vm285, 1, 0
  %v318 = vsel %vm286, 1, 0
  %v319 = vsel %vm287, 1, 0
  %v320 = vsel %vm288, 1, 0
  %v321 = vsel %vm289, 1, 0
  %v322 = vsel %vm290, 1, 0
  %v323 = vsel %vm291, 1, 0
  %v324 = vsel %vm292, 1, 0
  %v325 = vsel %vm293, 1, 0
  %v326 = vsel %vm294, 1, 0
  %v327 = vsel %vm295, 1, 0
  %v328 = vsel %vm296, 1, 0
  %v329 = vsel %vm297, 1, 0
  %v330 = vsel %vm298, 1, 0
  %v331 = vsel %vm299, 1, 0
  %v332 = vsel %vm300, 1, 0
  %v333 = vsel %vm301, 1, 0
  %v334 = vsel %vm302, 1, 0
  %v335 = vsel %vm303, 1, 0
  %v336 = vsel %vm304, 1, 0
  %v337 = vcvt.s32.f32 %v305
  %v338 = vcvt.s32.f32 %v306
  %v339 = vcvt.s32.f32 %v307
  %v340 = vcvt.s32.f32 %v308
  %v341 = vcvt.s32.f32 %v309
  %v342 = vcvt.s32.f32 %v310
  %v343 = vcvt.s32.f32 %v311
  %v344 = vcvt.s32.f32 %v312
  %v345 = vcvt.s32.f32 %v313
  %v346 = vcvt.s32.f32 %v314
  %v347 = vcvt.s32.f32 %v315
  %v348 = vcvt.s32.f32 %v316
  %v349 = vcvt.s32.f32 %v317
  %v350 = vcvt.s32.f32 %v318
  %v351 = vcvt.s32.f32 %v319
  %v352 = vcvt.s32.f32 %v320
  %v353 = vcvt.s32.f32 %v321
  %v354 = vcvt.s32.f32 %v322
  %v355 = vcvt.s32.f32 %v323
  %v356 = vcvt.s32.f32 %v324
  %v357 = vcvt.s32.f32 %v325
  %v358 = vcvt.s32.f32 %v326
  %v359 = vcvt.s32.f32 %v327
  %v360 = vcvt.s32.f32 %v328
  %v361 = vcvt.s32.f32 %v329
  %v362 = vcvt.s32.f32 %v330
  %v363 = vcvt.s32.f32 %v331
  %v364 = vcvt.s32.f32 %v332
  %v365 = vcvt.s32.f32 %v333
  %v366 = vcvt.s32.f32 %v334
  %v367 = vcvt.s32.f32 %v335
  %v368 = vcvt.s32.f32 %v336
  %v369 = vld [vmem:[%s104] sm:$0xff]
  %v370 = vld [vmem:[%s104 + $0x8] sm:$0xff]
  %v371 = vld [vmem:[%s104 + $0x10] sm:$0xff]
  %v372 = vld [vmem:[%s104 + $0x18] sm:$0xff]
  %v373 = vld [vmem:[%s104 + $0x20] sm:$0xff]
  %v374 = vld [vmem:[%s104 + $0x28] sm:$0xff]
  %v375 = vld [vmem:[%s104 + $0x30] sm:$0xff]
  %v376 = vld [vmem:[%s104 + $0x38] sm:$0xff]
  %v377 = vld [vmem:[%s104 + $0x40] sm:$0xff]
  %v378 = vld [vmem:[%s104 + $0x48] sm:$0xff]
  %v379 = vld [vmem:[%s104 + $0x50] sm:$0xff]
  %v380 = vld [vmem:[%s104 + $0x58] sm:$0xff]
  %v381 = vld [vmem:[%s104 + $0x60] sm:$0xff]
  %v382 = vld [vmem:[%s104 + $0x68] sm:$0xff]
  %v383 = vld [vmem:[%s104 + $0x70] sm:$0xff]
  %v384 = vld [vmem:[%s104 + $0x78] sm:$0xff]
  %v385 = vld [vmem:[%s104 + $0x80] sm:$0xff]
  %v386 = vld [vmem:[%s104 + $0x88] sm:$0xff]
  %v387 = vld [vmem:[%s104 + $0x90] sm:$0xff]
  %v388 = vld [vmem:[%s104 + $0x98] sm:$0xff]
  %v389 = vld [vmem:[%s104 + $0xa0] sm:$0xff]
  %v390 = vld [vmem:[%s104 + $0xa8] sm:$0xff]
  %v391 = vld [vmem:[%s104 + $0xb0] sm:$0xff]
  %v392 = vld [vmem:[%s104 + $0xb8] sm:$0xff]
  %v393 = vld [vmem:[%s104 + $0xc0] sm:$0xff]
  %v394 = vld [vmem:[%s104 + $0xc8] sm:$0xff]
  %v395 = vld [vmem:[%s104 + $0xd0] sm:$0xff]
  %v396 = vld [vmem:[%s104 + $0xd8] sm:$0xff]
  %v397 = vld [vmem:[%s104 + $0xe0] sm:$0xff]
  %v398 = vld [vmem:[%s104 + $0xe8] sm:$0xff]
  %v399 = vld [vmem:[%s104 + $0xf0] sm:$0xff]
  %v400 = vld [vmem:[%s104 + $0xf8] sm:$0xff]
  %v401 = vlaneseq
  %v402 = vand.u32 %v401, 127
  %v403 = vadd.s32 %v402, 1
  %404 = vset.pattern.permute.xlu0 0
  %405 = vperm.xlu0 %404, %v145
  %v406 = vpop.permute.xlu0 %405
  %407 = vset.pattern.permute.xlu0 0
  %408 = vperm.xlu0 %407, %v146
  %v409 = vpop.permute.xlu0 %408
  %410 = vset.pattern.permute.xlu0 0
  %411 = vperm.xlu0 %410, %v147
  %v412 = vpop.permute.xlu0 %411
  %413 = vset.pattern.permute.xlu0 0
  %414 = vperm.xlu0 %413, %v148
  %v415 = vpop.permute.xlu0 %414
  %416 = vset.pattern.permute.xlu0 0
  %417 = vperm.xlu0 %416, %v149
  %v418 = vpop.permute.xlu0 %417
  %419 = vset.pattern.permute.xlu0 0
  %420 = vperm.xlu0 %419, %v150
  %v421 = vpop.permute.xlu0 %420
  %422 = vset.pattern.permute.xlu0 0
  %423 = vperm.xlu0 %422, %v151
  %v424 = vpop.permute.xlu0 %423
  %425 = vset.pattern.permute.xlu0 0
  %426 = vperm.xlu0 %425, %v152
  %v427 = vpop.permute.xlu0 %426
  %428 = vset.pattern.permute.xlu0 0
  %429 = vperm.xlu0 %428, %v153
  %v430 = vpop.permute.xlu0 %429
  %431 = vset.pattern.permute.xlu0 0
  %432 = vperm.xlu0 %431, %v154
  %v433 = vpop.permute.xlu0 %432
  %434 = vset.pattern.permute.xlu0 0
  %435 = vperm.xlu0 %434, %v155
  %v436 = vpop.permute.xlu0 %435
  %437 = vset.pattern.permute.xlu0 0
  %438 = vperm.xlu0 %437, %v156
  %v439 = vpop.permute.xlu0 %438
  %440 = vset.pattern.permute.xlu0 0
  %441 = vperm.xlu0 %440, %v157
  %v442 = vpop.permute.xlu0 %441
  %443 = vset.pattern.permute.xlu0 0
  %444 = vperm.xlu0 %443, %v158
  %v445 = vpop.permute.xlu0 %444
  %446 = vset.pattern.permute.xlu0 0
  %447 = vperm.xlu0 %446, %v159
  %v448 = vpop.permute.xlu0 %447
  %449 = vset.pattern.permute.xlu0 0
  %450 = vperm.xlu0 %449, %v160
  %v451 = vpop.permute.xlu0 %450
  %452 = vset.pattern.permute.xlu0 0
  %453 = vperm.xlu0 %452, %v161
  %v454 = vpop.permute.xlu0 %453
  %455 = vset.pattern.permute.xlu0 0
  %456 = vperm.xlu0 %455, %v162
  %v457 = vpop.permute.xlu0 %456
  %458 = vset.pattern.permute.xlu0 0
  %459 = vperm.xlu0 %458, %v163
  %v460 = vpop.permute.xlu0 %459
  %461 = vset.pattern.permute.xlu0 0
  %462 = vperm.xlu0 %461, %v164
  %v463 = vpop.permute.xlu0 %462
  %464 = vset.pattern.permute.xlu0 0
  %465 = vperm.xlu0 %464, %v165
  %v466 = vpop.permute.xlu0 %465
  %467 = vset.pattern.permute.xlu0 0
  %468 = vperm.xlu0 %467, %v166
  %v469 = vpop.permute.xlu0 %468
  %470 = vset.pattern.permute.xlu0 0
  %471 = vperm.xlu0 %470, %v167
  %v472 = vpop.permute.xlu0 %471
  %473 = vset.pattern.permute.xlu0 0
  %474 = vperm.xlu0 %473, %v168
  %v475 = vpop.permute.xlu0 %474
  %476 = vset.pattern.permute.xlu0 0
  %477 = vperm.xlu0 %476, %v169
  %v478 = vpop.permute.xlu0 %477
  %479 = vset.pattern.permute.xlu0 0
  %480 = vperm.xlu0 %479, %v170
  %v481 = vpop.permute.xlu0 %480
  %482 = vset.pattern.permute.xlu0 0
  %483 = vperm.xlu0 %482, %v171
  %v484 = vpop.permute.xlu0 %483
  %485 = vset.pattern.permute.xlu0 0
  %486 = vperm.xlu0 %485, %v172
  %v487 = vpop.permute.xlu0 %486
  %488 = vset.pattern.permute.xlu0 0
  %489 = vperm.xlu0 %488, %v173
  %v490 = vpop.permute.xlu0 %489
  %491 = vset.pattern.permute.xlu0 0
  %492 = vperm.xlu0 %491, %v174
  %v493 = vpop.permute.xlu0 %492
  %494 = vset.pattern.permute.xlu0 0
  %495 = vperm.xlu0 %494, %v175
  %v496 = vpop.permute.xlu0 %495
  %497 = vset.pattern.permute.xlu0 0
  %498 = vperm.xlu0 %497, %v176
  %v499 = vpop.permute.xlu0 %498
  %vm500 = vcmp.eq.s32.totalorder %v406, %v403
  %vm501 = vcmp.eq.s32.totalorder %v409, %v403
  %vm502 = vcmp.eq.s32.totalorder %v412, %v403
  %vm503 = vcmp.eq.s32.totalorder %v415, %v403
  %vm504 = vcmp.eq.s32.totalorder %v418, %v403
  %vm505 = vcmp.eq.s32.totalorder %v421, %v403
  %vm506 = vcmp.eq.s32.totalorder %v424, %v403
  %vm507 = vcmp.eq.s32.totalorder %v427, %v403
  %vm508 = vcmp.eq.s32.totalorder %v430, %v403
  %vm509 = vcmp.eq.s32.totalorder %v433, %v403
  %vm510 = vcmp.eq.s32.totalorder %v436, %v403
  %vm511 = vcmp.eq.s32.totalorder %v439, %v403
  %vm512 = vcmp.eq.s32.totalorder %v442, %v403
  %vm513 = vcmp.eq.s32.totalorder %v445, %v403
  %vm514 = vcmp.eq.s32.totalorder %v448, %v403
  %vm515 = vcmp.eq.s32.totalorder %v451, %v403
  %vm516 = vcmp.eq.s32.totalorder %v454, %v403
  %vm517 = vcmp.eq.s32.totalorder %v457, %v403
  %vm518 = vcmp.eq.s32.totalorder %v460, %v403
  %vm519 = vcmp.eq.s32.totalorder %v463, %v403
  %vm520 = vcmp.eq.s32.totalorder %v466, %v403
  %vm521 = vcmp.eq.s32.totalorder %v469, %v403
  %vm522 = vcmp.eq.s32.totalorder %v472, %v403
  %vm523 = vcmp.eq.s32.totalorder %v475, %v403
  %vm524 = vcmp.eq.s32.totalorder %v478, %v403
  %vm525 = vcmp.eq.s32.totalorder %v481, %v403
  %vm526 = vcmp.eq.s32.totalorder %v484, %v403
  %vm527 = vcmp.eq.s32.totalorder %v487, %v403
  %vm528 = vcmp.eq.s32.totalorder %v490, %v403
  %vm529 = vcmp.eq.s32.totalorder %v493, %v403
  %vm530 = vcmp.eq.s32.totalorder %v496, %v403
  %vm531 = vcmp.eq.s32.totalorder %v499, %v403
  %v532 = vsel %vm500, 1, 0
  %v533 = vsel %vm501, 1, 0
  %v534 = vsel %vm502, 1, 0
  %v535 = vsel %vm503, 1, 0
  %v536 = vsel %vm504, 1, 0
  %v537 = vsel %vm505, 1, 0
  %v538 = vsel %vm506, 1, 0
  %v539 = vsel %vm507, 1, 0
  %v540 = vsel %vm508, 1, 0
  %v541 = vsel %vm509, 1, 0
  %v542 = vsel %vm510, 1, 0
  %v543 = vsel %vm511, 1, 0
  %v544 = vsel %vm512, 1, 0
  %v545 = vsel %vm513, 1, 0
  %v546 = vsel %vm514, 1, 0
  %v547 = vsel %vm515, 1, 0
  %v548 = vsel %vm516, 1, 0
  %v549 = vsel %vm517, 1, 0
  %v550 = vsel %vm518, 1, 0
  %v551 = vsel %vm519, 1, 0
  %v552 = vsel %vm520, 1, 0
  %v553 = vsel %vm521, 1, 0
  %v554 = vsel %vm522, 1, 0
  %v555 = vsel %vm523, 1, 0
  %v556 = vsel %vm524, 1, 0
  %v557 = vsel %vm525, 1, 0
  %v558 = vsel %vm526, 1, 0
  %v559 = vsel %vm527, 1, 0
  %v560 = vsel %vm528, 1, 0
  %v561 = vsel %vm529, 1, 0
  %v562 = vsel %vm530, 1, 0
  %v563 = vsel %vm531, 1, 0
  %v564 = vcvt.s32.f32 %v532
  %v565 = vcvt.s32.f32 %v533
  %v566 = vcvt.s32.f32 %v534
  %v567 = vcvt.s32.f32 %v535
  %v568 = vcvt.s32.f32 %v536
  %v569 = vcvt.s32.f32 %v537
  %v570 = vcvt.s32.f32 %v538
  %v571 = vcvt.s32.f32 %v539
  %v572 = vcvt.s32.f32 %v540
  %v573 = vcvt.s32.f32 %v541
  %v574 = vcvt.s32.f32 %v542
  %v575 = vcvt.s32.f32 %v543
  %v576 = vcvt.s32.f32 %v544
  %v577 = vcvt.s32.f32 %v545
  %v578 = vcvt.s32.f32 %v546
  %v579 = vcvt.s32.f32 %v547
  %v580 = vcvt.s32.f32 %v548
  %v581 = vcvt.s32.f32 %v549
  %v582 = vcvt.s32.f32 %v550
  %v583 = vcvt.s32.f32 %v551
  %v584 = vcvt.s32.f32 %v552
  %v585 = vcvt.s32.f32 %v553
  %v586 = vcvt.s32.f32 %v554
  %v587 = vcvt.s32.f32 %v555
  %v588 = vcvt.s32.f32 %v556
  %v589 = vcvt.s32.f32 %v557
  %v590 = vcvt.s32.f32 %v558
  %v591 = vcvt.s32.f32 %v559
  %v592 = vcvt.s32.f32 %v560
  %v593 = vcvt.s32.f32 %v561
  %v594 = vcvt.s32.f32 %v562
  %v595 = vcvt.s32.f32 %v563
  %v596 = vand.u32 2147483647, %v369
  %v597 = vand.u32 2147483647, %v370
  %v598 = vand.u32 2147483647, %v371
  %v599 = vand.u32 2147483647, %v372
  %v600 = vand.u32 2147483647, %v373
  %v601 = vand.u32 2147483647, %v374
  %v602 = vand.u32 2147483647, %v375
  %v603 = vand.u32 2147483647, %v376
  %v604 = vand.u32 2147483647, %v377
  %v605 = vand.u32 2147483647, %v378
  %v606 = vand.u32 2147483647, %v379
  %v607 = vand.u32 2147483647, %v380
  %v608 = vand.u32 2147483647, %v381
  %v609 = vand.u32 2147483647, %v382
  %v610 = vand.u32 2147483647, %v383
  %v611 = vand.u32 2147483647, %v384
  %v612 = vand.u32 2147483647, %v385
  %v613 = vand.u32 2147483647, %v386
  %v614 = vand.u32 2147483647, %v387
  %v615 = vand.u32 2147483647, %v388
  %v616 = vand.u32 2147483647, %v389
  %v617 = vand.u32 2147483647, %v390
  %v618 = vand.u32 2147483647, %v391
  %v619 = vand.u32 2147483647, %v392
  %v620 = vand.u32 2147483647, %v393
  %v621 = vand.u32 2147483647, %v394
  %v622 = vand.u32 2147483647, %v395
  %v623 = vand.u32 2147483647, %v396
  %v624 = vand.u32 2147483647, %v397
  %v625 = vand.u32 2147483647, %v398
  %v626 = vand.u32 2147483647, %v399
  %v627 = vand.u32 2147483647, %v400
  %v628 = vsub.f32 0.0, %v596
  %v629 = vsub.f32 0.0, %v597
  %v630 = vsub.f32 0.0, %v598
  %v631 = vsub.f32 0.0, %v599
  %v632 = vsub.f32 0.0, %v600
  %v633 = vsub.f32 0.0, %v601
  %v634 = vsub.f32 0.0, %v602
  %v635 = vsub.f32 0.0, %v603
  %v636 = vsub.f32 0.0, %v604
  %v637 = vsub.f32 0.0, %v605
  %v638 = vsub.f32 0.0, %v606
  %v639 = vsub.f32 0.0, %v607
  %v640 = vsub.f32 0.0, %v608
  %v641 = vsub.f32 0.0, %v609
  %v642 = vsub.f32 0.0, %v610
  %v643 = vsub.f32 0.0, %v611
  %v644 = vsub.f32 0.0, %v612
  %v645 = vsub.f32 0.0, %v613
  %v646 = vsub.f32 0.0, %v614
  %v647 = vsub.f32 0.0, %v615
  %v648 = vsub.f32 0.0, %v616
  %v649 = vsub.f32 0.0, %v617
  %v650 = vsub.f32 0.0, %v618
  %v651 = vsub.f32 0.0, %v619
  %v652 = vsub.f32 0.0, %v620
  %v653 = vsub.f32 0.0, %v621
  %v654 = vsub.f32 0.0, %v622
  %v655 = vsub.f32 0.0, %v623
  %v656 = vsub.f32 0.0, %v624
  %v657 = vsub.f32 0.0, %v625
  %v658 = vsub.f32 0.0, %v626
  %v659 = vsub.f32 0.0, %v627
  %v660 = vmul.f32 %v628, 1.442695
  %v661 = vpow.pop %v660
  %v662 = vmul.f32 %v629, 1.442695
  %v663 = vpow.pop %v662
  %v664 = vmul.f32 %v630, 1.442695
  %v665 = vpow.pop %v664
  %v666 = vmul.f32 %v631, 1.442695
  %v667 = vpow.pop %v666
  %v668 = vmul.f32 %v632, 1.442695
  %v669 = vpow.pop %v668
  %v670 = vmul.f32 %v633, 1.442695
  %v671 = vpow.pop %v670
  %v672 = vmul.f32 %v634, 1.442695
  %v673 = vpow.pop %v672
  %v674 = vmul.f32 %v635, 1.442695
  %v675 = vpow.pop %v674
  %v676 = vmul.f32 %v636, 1.442695
  %v677 = vpow.pop %v676
  %v678 = vmul.f32 %v637, 1.442695
  %v679 = vpow.pop %v678
  %v680 = vmul.f32 %v638, 1.442695
  %v681 = vpow.pop %v680
  %v682 = vmul.f32 %v639, 1.442695
  %v683 = vpow.pop %v682
  %v684 = vmul.f32 %v640, 1.442695
  %v685 = vpow.pop %v684
  %v686 = vmul.f32 %v641, 1.442695
  %v687 = vpow.pop %v686
  %v688 = vmul.f32 %v642, 1.442695
  %v689 = vpow.pop %v688
  %v690 = vmul.f32 %v643, 1.442695
  %v691 = vpow.pop %v690
  %v692 = vmul.f32 %v644, 1.442695
  %v693 = vpow.pop %v692
  %v694 = vmul.f32 %v645, 1.442695
  %v695 = vpow.pop %v694
  %v696 = vmul.f32 %v646, 1.442695
  %v697 = vpow.pop %v696
  %v698 = vmul.f32 %v647, 1.442695
  %v699 = vpow.pop %v698
  %v700 = vmul.f32 %v648, 1.442695
  %v701 = vpow.pop %v700
  %v702 = vmul.f32 %v649, 1.442695
  %v703 = vpow.pop %v702
  %v704 = vmul.f32 %v650, 1.442695
  %v705 = vpow.pop %v704
  %v706 = vmul.f32 %v651, 1.442695
  %v707 = vpow.pop %v706
  %v708 = vmul.f32 %v652, 1.442695
  %v709 = vpow.pop %v708
  %v710 = vmul.f32 %v653, 1.442695
  %v711 = vpow.pop %v710
  %v712 = vmul.f32 %v654, 1.442695
  %v713 = vpow.pop %v712
  %v714 = vmul.f32 %v655, 1.442695
  %v715 = vpow.pop %v714
  %v716 = vmul.f32 %v656, 1.442695
  %v717 = vpow.pop %v716
  %v718 = vmul.f32 %v657, 1.442695
  %v719 = vpow.pop %v718
  %v720 = vmul.f32 %v658, 1.442695
  %v721 = vpow.pop %v720
  %v722 = vmul.f32 %v659, 1.442695
  %v723 = vpow.pop %v722
  %v724 = vadd.f32 %v661, 1.0
  %v725 = vadd.f32 %v663, 1.0
  %v726 = vadd.f32 %v665, 1.0
  %v727 = vadd.f32 %v667, 1.0
  %v728 = vadd.f32 %v669, 1.0
  %v729 = vadd.f32 %v671, 1.0
  %v730 = vadd.f32 %v673, 1.0
  %v731 = vadd.f32 %v675, 1.0
  %v732 = vadd.f32 %v677, 1.0
  %v733 = vadd.f32 %v679, 1.0
  %v734 = vadd.f32 %v681, 1.0
  %v735 = vadd.f32 %v683, 1.0
  %v736 = vadd.f32 %v685, 1.0
  %v737 = vadd.f32 %v687, 1.0
  %v738 = vadd.f32 %v689, 1.0
  %v739 = vadd.f32 %v691, 1.0
  %v740 = vadd.f32 %v693, 1.0
  %v741 = vadd.f32 %v695, 1.0
  %v742 = vadd.f32 %v697, 1.0
  %v743 = vadd.f32 %v699, 1.0
  %v744 = vadd.f32 %v701, 1.0
  %v745 = vadd.f32 %v703, 1.0
  %v746 = vadd.f32 %v705, 1.0
  %v747 = vadd.f32 %v707, 1.0
  %v748 = vadd.f32 %v709, 1.0
  %v749 = vadd.f32 %v711, 1.0
  %v750 = vadd.f32 %v713, 1.0
  %v751 = vadd.f32 %v715, 1.0
  %v752 = vadd.f32 %v717, 1.0
  %v753 = vadd.f32 %v719, 1.0
  %v754 = vadd.f32 %v721, 1.0
  %v755 = vadd.f32 %v723, 1.0
  %v756 = vlog2.pop %v724
  %v757 = vmul.f32 %v756, 0.6931472
  %v758 = vlog2.pop %v725
  %v759 = vmul.f32 %v758, 0.6931472
  %v760 = vlog2.pop %v726
  %v761 = vmul.f32 %v760, 0.6931472
  %v762 = vlog2.pop %v727
  %v763 = vmul.f32 %v762, 0.6931472
  %v764 = vlog2.pop %v728
  %v765 = vmul.f32 %v764, 0.6931472
  %v766 = vlog2.pop %v729
  %v767 = vmul.f32 %v766, 0.6931472
  %v768 = vlog2.pop %v730
  %v769 = vmul.f32 %v768, 0.6931472
  %v770 = vlog2.pop %v731
  %v771 = vmul.f32 %v770, 0.6931472
  %v772 = vlog2.pop %v732
  %v773 = vmul.f32 %v772, 0.6931472
  %v774 = vlog2.pop %v733
  %v775 = vmul.f32 %v774, 0.6931472
  %v776 = vlog2.pop %v734
  %v777 = vmul.f32 %v776, 0.6931472
  %v778 = vlog2.pop %v735
  %v779 = vmul.f32 %v778, 0.6931472
  %v780 = vlog2.pop %v736
  %v781 = vmul.f32 %v780, 0.6931472
  %v782 = vlog2.pop %v737
  %v783 = vmul.f32 %v782, 0.6931472
  %v784 = vlog2.pop %v738
  %v785 = vmul.f32 %v784, 0.6931472
  %v786 = vlog2.pop %v739
  %v787 = vmul.f32 %v786, 0.6931472
  %v788 = vlog2.pop %v740
  %v789 = vmul.f32 %v788, 0.6931472
  %v790 = vlog2.pop %v741
  %v791 = vmul.f32 %v790, 0.6931472
  %v792 = vlog2.pop %v742
  %v793 = vmul.f32 %v792, 0.6931472
  %v794 = vlog2.pop %v743
  %v795 = vmul.f32 %v794, 0.6931472
  %v796 = vlog2.pop %v744
  %v797 = vmul.f32 %v796, 0.6931472
  %v798 = vlog2.pop %v745
  %v799 = vmul.f32 %v798, 0.6931472
  %v800 = vlog2.pop %v746
  %v801 = vmul.f32 %v800, 0.6931472
  %v802 = vlog2.pop %v747
  %v803 = vmul.f32 %v802, 0.6931472
  %v804 = vlog2.pop %v748
  %v805 = vmul.f32 %v804, 0.6931472
  %v806 = vlog2.pop %v749
  %v807 = vmul.f32 %v806, 0.6931472
  %v808 = vlog2.pop %v750
  %v809 = vmul.f32 %v808, 0.6931472
  %v810 = vlog2.pop %v751
  %v811 = vmul.f32 %v810, 0.6931472
  %v812 = vlog2.pop %v752
  %v813 = vmul.f32 %v812, 0.6931472
  %v814 = vlog2.pop %v753
  %v815 = vmul.f32 %v814, 0.6931472
  %v816 = vlog2.pop %v754
  %v817 = vmul.f32 %v816, 0.6931472
  %v818 = vlog2.pop %v755
  %v819 = vmul.f32 %v818, 0.6931472
  %v820 = vmul.f32 %v564, 2.0
  %v821 = vmul.f32 %v565, 2.0
  %v822 = vmul.f32 %v566, 2.0
  %v823 = vmul.f32 %v567, 2.0
  %v824 = vmul.f32 %v568, 2.0
  %v825 = vmul.f32 %v569, 2.0
  %v826 = vmul.f32 %v570, 2.0
  %v827 = vmul.f32 %v571, 2.0
  %v828 = vmul.f32 %v572, 2.0
  %v829 = vmul.f32 %v573, 2.0
  %v830 = vmul.f32 %v574, 2.0
  %v831 = vmul.f32 %v575, 2.0
  %v832 = vmul.f32 %v576, 2.0
  %v833 = vmul.f32 %v577, 2.0
  %v834 = vmul.f32 %v578, 2.0
  %v835 = vmul.f32 %v579, 2.0
  %v836 = vmul.f32 %v580, 2.0
  %v837 = vmul.f32 %v581, 2.0
  %v838 = vmul.f32 %v582, 2.0
  %v839 = vmul.f32 %v583, 2.0
  %v840 = vmul.f32 %v584, 2.0
  %v841 = vmul.f32 %v585, 2.0
  %v842 = vmul.f32 %v586, 2.0
  %v843 = vmul.f32 %v587, 2.0
  %v844 = vmul.f32 %v588, 2.0
  %v845 = vmul.f32 %v589, 2.0
  %v846 = vmul.f32 %v590, 2.0
  %v847 = vmul.f32 %v591, 2.0
  %v848 = vmul.f32 %v592, 2.0
  %v849 = vmul.f32 %v593, 2.0
  %v850 = vmul.f32 %v594, 2.0
  %v851 = vmul.f32 %v595, 2.0
  %v852 = vsub.f32 1.0, %v820
  %v853 = vsub.f32 1.0, %v821
  %v854 = vsub.f32 1.0, %v822
  %v855 = vsub.f32 1.0, %v823
  %v856 = vsub.f32 1.0, %v824
  %v857 = vsub.f32 1.0, %v825
  %v858 = vsub.f32 1.0, %v826
  %v859 = vsub.f32 1.0, %v827
  %v860 = vsub.f32 1.0, %v828
  %v861 = vsub.f32 1.0, %v829
  %v862 = vsub.f32 1.0, %v830
  %v863 = vsub.f32 1.0, %v831
  %v864 = vsub.f32 1.0, %v832
  %v865 = vsub.f32 1.0, %v833
  %v866 = vsub.f32 1.0, %v834
  %v867 = vsub.f32 1.0, %v835
  %v868 = vsub.f32 1.0, %v836
  %v869 = vsub.f32 1.0, %v837
  %v870 = vsub.f32 1.0, %v838
  %v871 = vsub.f32 1.0, %v839
  %v872 = vsub.f32 1.0, %v840
  %v873 = vsub.f32 1.0, %v841
  %v874 = vsub.f32 1.0, %v842
  %v875 = vsub.f32 1.0, %v843
  %v876 = vsub.f32 1.0, %v844
  %v877 = vsub.f32 1.0, %v845
  %v878 = vsub.f32 1.0, %v846
  %v879 = vsub.f32 1.0, %v847
  %v880 = vsub.f32 1.0, %v848
  %v881 = vsub.f32 1.0, %v849
  %v882 = vsub.f32 1.0, %v850
  %v883 = vsub.f32 1.0, %v851
  %v884 = vmul.f32 %v852, %v369
  %v885 = vmul.f32 %v853, %v370
  %v886 = vmul.f32 %v854, %v371
  %v887 = vmul.f32 %v855, %v372
  %v888 = vmul.f32 %v856, %v373
  %v889 = vmul.f32 %v857, %v374
  %v890 = vmul.f32 %v858, %v375
  %v891 = vmul.f32 %v859, %v376
  %v892 = vmul.f32 %v860, %v377
  %v893 = vmul.f32 %v861, %v378
  %v894 = vmul.f32 %v862, %v379
  %v895 = vmul.f32 %v863, %v380
  %v896 = vmul.f32 %v864, %v381
  %v897 = vmul.f32 %v865, %v382
  %v898 = vmul.f32 %v866, %v383
  %v899 = vmul.f32 %v867, %v384
  %v900 = vmul.f32 %v868, %v385
  %v901 = vmul.f32 %v869, %v386
  %v902 = vmul.f32 %v870, %v387
  %v903 = vmul.f32 %v871, %v388
  %v904 = vmul.f32 %v872, %v389
  %v905 = vmul.f32 %v873, %v390
  %v906 = vmul.f32 %v874, %v391
  %v907 = vmul.f32 %v875, %v392
  %v908 = vmul.f32 %v876, %v393
  %v909 = vmul.f32 %v877, %v394
  %v910 = vmul.f32 %v878, %v395
  %v911 = vmul.f32 %v879, %v396
  %v912 = vmul.f32 %v880, %v397
  %v913 = vmul.f32 %v881, %v398
  %v914 = vmul.f32 %v882, %v399
  %v915 = vmul.f32 %v883, %v400
  %vm916 = vcmp.ge.f32.partialorder %v884, 0.0
  %vm917 = vcmp.ge.f32.partialorder %v885, 0.0
  %vm918 = vcmp.ge.f32.partialorder %v886, 0.0
  %vm919 = vcmp.ge.f32.partialorder %v887, 0.0
  %vm920 = vcmp.ge.f32.partialorder %v888, 0.0
  %vm921 = vcmp.ge.f32.partialorder %v889, 0.0
  %vm922 = vcmp.ge.f32.partialorder %v890, 0.0
  %vm923 = vcmp.ge.f32.partialorder %v891, 0.0
  %vm924 = vcmp.ge.f32.partialorder %v892, 0.0
  %vm925 = vcmp.ge.f32.partialorder %v893, 0.0
  %vm926 = vcmp.ge.f32.partialorder %v894, 0.0
  %vm927 = vcmp.ge.f32.partialorder %v895, 0.0
  %vm928 = vcmp.ge.f32.partialorder %v896, 0.0
  %vm929 = vcmp.ge.f32.partialorder %v897, 0.0
  %vm930 = vcmp.ge.f32.partialorder %v898, 0.0
  %vm931 = vcmp.ge.f32.partialorder %v899, 0.0
  %vm932 = vcmp.ge.f32.partialorder %v900, 0.0
  %vm933 = vcmp.ge.f32.partialorder %v901, 0.0
  %vm934 = vcmp.ge.f32.partialorder %v902, 0.0
  %vm935 = vcmp.ge.f32.partialorder %v903, 0.0
  %vm936 = vcmp.ge.f32.partialorder %v904, 0.0
  %vm937 = vcmp.ge.f32.partialorder %v905, 0.0
  %vm938 = vcmp.ge.f32.partialorder %v906, 0.0
  %vm939 = vcmp.ge.f32.partialorder %v907, 0.0
  %vm940 = vcmp.ge.f32.partialorder %v908, 0.0
  %vm941 = vcmp.ge.f32.partialorder %v909, 0.0
  %vm942 = vcmp.ge.f32.partialorder %v910, 0.0
  %vm943 = vcmp.ge.f32.partialorder %v911, 0.0
  %vm944 = vcmp.ge.f32.partialorder %v912, 0.0
  %vm945 = vcmp.ge.f32.partialorder %v913, 0.0
  %vm946 = vcmp.ge.f32.partialorder %v914, 0.0
  %vm947 = vcmp.ge.f32.partialorder %v915, 0.0
  %v948 = vsel %vm916, 1.0, %v661
  %v949 = vsel %vm917, 1.0, %v663
  %v950 = vsel %vm918, 1.0, %v665
  %v951 = vsel %vm919, 1.0, %v667
  %v952 = vsel %vm920, 1.0, %v669
  %v953 = vsel %vm921, 1.0, %v671
  %v954 = vsel %vm922, 1.0, %v673
  %v955 = vsel %vm923, 1.0, %v675
  %v956 = vsel %vm924, 1.0, %v677
  %v957 = vsel %vm925, 1.0, %v679
  %v958 = vsel %vm926, 1.0, %v681
  %v959 = vsel %vm927, 1.0, %v683
  %v960 = vsel %vm928, 1.0, %v685
  %v961 = vsel %vm929, 1.0, %v687
  %v962 = vsel %vm930, 1.0, %v689
  %v963 = vsel %vm931, 1.0, %v691
  %v964 = vsel %vm932, 1.0, %v693
  %v965 = vsel %vm933, 1.0, %v695
  %v966 = vsel %vm934, 1.0, %v697
  %v967 = vsel %vm935, 1.0, %v699
  %v968 = vsel %vm936, 1.0, %v701
  %v969 = vsel %vm937, 1.0, %v703
  %v970 = vsel %vm938, 1.0, %v705
  %v971 = vsel %vm939, 1.0, %v707
  %v972 = vsel %vm940, 1.0, %v709
  %v973 = vsel %vm941, 1.0, %v711
  %v974 = vsel %vm942, 1.0, %v713
  %v975 = vsel %vm943, 1.0, %v715
  %v976 = vsel %vm944, 1.0, %v717
  %v977 = vsel %vm945, 1.0, %v719
  %v978 = vsel %vm946, 1.0, %v721
  %v979 = vsel %vm947, 1.0, %v723
  %v980 = vrcp.pop %v724
  %v981 = vmul.f32 %v948, %v980
  %v982 = vrcp.pop %v725
  %v983 = vmul.f32 %v949, %v982
  %v984 = vrcp.pop %v726
  %v985 = vmul.f32 %v950, %v984
  %v986 = vrcp.pop %v727
  %v987 = vmul.f32 %v951, %v986
  %v988 = vrcp.pop %v728
  %v989 = vmul.f32 %v952, %v988
  %v990 = vrcp.pop %v729
  %v991 = vmul.f32 %v953, %v990
  %v992 = vrcp.pop %v730
  %v993 = vmul.f32 %v954, %v992
  %v994 = vrcp.pop %v731
  %v995 = vmul.f32 %v955, %v994
  %v996 = vrcp.pop %v732
  %v997 = vmul.f32 %v956, %v996
  %v998 = vrcp.pop %v733
  %v999 = vmul.f32 %v957, %v998
  %v1000 = vrcp.pop %v734
  %v1001 = vmul.f32 %v958, %v1000
  %v1002 = vrcp.pop %v735
  %v1003 = vmul.f32 %v959, %v1002
  %v1004 = vrcp.pop %v736
  %v1005 = vmul.f32 %v960, %v1004
  %v1006 = vrcp.pop %v737
  %v1007 = vmul.f32 %v961, %v1006
  %v1008 = vrcp.pop %v738
  %v1009 = vmul.f32 %v962, %v1008
  %v1010 = vrcp.pop %v739
  %v1011 = vmul.f32 %v963, %v1010
  %v1012 = vrcp.pop %v740
  %v1013 = vmul.f32 %v964, %v1012
  %v1014 = vrcp.pop %v741
  %v1015 = vmul.f32 %v965, %v1014
  %v1016 = vrcp.pop %v742
  %v1017 = vmul.f32 %v966, %v1016
  %v1018 = vrcp.pop %v743
  %v1019 = vmul.f32 %v967, %v1018
  %v1020 = vrcp.pop %v744
  %v1021 = vmul.f32 %v968, %v1020
  %v1022 = vrcp.pop %v745
  %v1023 = vmul.f32 %v969, %v1022
  %v1024 = vrcp.pop %v746
  %v1025 = vmul.f32 %v970, %v1024
  %v1026 = vrcp.pop %v747
  %v1027 = vmul.f32 %v971, %v1026
  %v1028 = vrcp.pop %v748
  %v1029 = vmul.f32 %v972, %v1028
  %v1030 = vrcp.pop %v749
  %v1031 = vmul.f32 %v973, %v1030
  %v1032 = vrcp.pop %v750
  %v1033 = vmul.f32 %v974, %v1032
  %v1034 = vrcp.pop %v751
  %v1035 = vmul.f32 %v975, %v1034
  %v1036 = vrcp.pop %v752
  %v1037 = vmul.f32 %v976, %v1036
  %v1038 = vrcp.pop %v753
  %v1039 = vmul.f32 %v977, %v1038
  %v1040 = vrcp.pop %v754
  %v1041 = vmul.f32 %v978, %v1040
  %v1042 = vrcp.pop %v755
  %v1043 = vmul.f32 %v979, %v1042
  %v1044 = vmax.f32 %v884, 0.0
  %v1045 = vmax.f32 %v885, 0.0
  %v1046 = vmax.f32 %v886, 0.0
  %v1047 = vmax.f32 %v887, 0.0
  %v1048 = vmax.f32 %v888, 0.0
  %v1049 = vmax.f32 %v889, 0.0
  %v1050 = vmax.f32 %v890, 0.0
  %v1051 = vmax.f32 %v891, 0.0
  %v1052 = vmax.f32 %v892, 0.0
  %v1053 = vmax.f32 %v893, 0.0
  %v1054 = vmax.f32 %v894, 0.0
  %v1055 = vmax.f32 %v895, 0.0
  %v1056 = vmax.f32 %v896, 0.0
  %v1057 = vmax.f32 %v897, 0.0
  %v1058 = vmax.f32 %v898, 0.0
  %v1059 = vmax.f32 %v899, 0.0
  %v1060 = vmax.f32 %v900, 0.0
  %v1061 = vmax.f32 %v901, 0.0
  %v1062 = vmax.f32 %v902, 0.0
  %v1063 = vmax.f32 %v903, 0.0
  %v1064 = vmax.f32 %v904, 0.0
  %v1065 = vmax.f32 %v905, 0.0
  %v1066 = vmax.f32 %v906, 0.0
  %v1067 = vmax.f32 %v907, 0.0
  %v1068 = vmax.f32 %v908, 0.0
  %v1069 = vmax.f32 %v909, 0.0
  %v1070 = vmax.f32 %v910, 0.0
  %v1071 = vmax.f32 %v911, 0.0
  %v1072 = vmax.f32 %v912, 0.0
  %v1073 = vmax.f32 %v913, 0.0
  %v1074 = vmax.f32 %v914, 0.0
  %v1075 = vmax.f32 %v915, 0.0
  %v1076 = vadd.f32 %v1044, %v757
  %v1077 = vadd.f32 %v1045, %v759
  %v1078 = vadd.f32 %v1046, %v761
  %v1079 = vadd.f32 %v1047, %v763
  %v1080 = vadd.f32 %v1048, %v765
  %v1081 = vadd.f32 %v1049, %v767
  %v1082 = vadd.f32 %v1050, %v769
  %v1083 = vadd.f32 %v1051, %v771
  %v1084 = vadd.f32 %v1052, %v773
  %v1085 = vadd.f32 %v1053, %v775
  %v1086 = vadd.f32 %v1054, %v777
  %v1087 = vadd.f32 %v1055, %v779
  %v1088 = vadd.f32 %v1056, %v781
  %v1089 = vadd.f32 %v1057, %v783
  %v1090 = vadd.f32 %v1058, %v785
  %v1091 = vadd.f32 %v1059, %v787
  %v1092 = vadd.f32 %v1060, %v789
  %v1093 = vadd.f32 %v1061, %v791
  %v1094 = vadd.f32 %v1062, %v793
  %v1095 = vadd.f32 %v1063, %v795
  %v1096 = vadd.f32 %v1064, %v797
  %v1097 = vadd.f32 %v1065, %v799
  %v1098 = vadd.f32 %v1066, %v801
  %v1099 = vadd.f32 %v1067, %v803
  %v1100 = vadd.f32 %v1068, %v805
  %v1101 = vadd.f32 %v1069, %v807
  %v1102 = vadd.f32 %v1070, %v809
  %v1103 = vadd.f32 %v1071, %v811
  %v1104 = vadd.f32 %v1072, %v813
  %v1105 = vadd.f32 %v1073, %v815
  %v1106 = vadd.f32 %v1074, %v817
  %v1107 = vadd.f32 %v1075, %v819
  %v1108 = vmul.f32 %v564, -0.5
  %v1109 = vmul.f32 %v565, -0.5
  %v1110 = vmul.f32 %v566, -0.5
  %v1111 = vmul.f32 %v567, -0.5
  %v1112 = vmul.f32 %v568, -0.5
  %v1113 = vmul.f32 %v569, -0.5
  %v1114 = vmul.f32 %v570, -0.5
  %v1115 = vmul.f32 %v571, -0.5
  %v1116 = vmul.f32 %v572, -0.5
  %v1117 = vmul.f32 %v573, -0.5
  %v1118 = vmul.f32 %v574, -0.5
  %v1119 = vmul.f32 %v575, -0.5
  %v1120 = vmul.f32 %v576, -0.5
  %v1121 = vmul.f32 %v577, -0.5
  %v1122 = vmul.f32 %v578, -0.5
  %v1123 = vmul.f32 %v579, -0.5
  %v1124 = vmul.f32 %v580, -0.5
  %v1125 = vmul.f32 %v581, -0.5
  %v1126 = vmul.f32 %v582, -0.5
  %v1127 = vmul.f32 %v583, -0.5
  %v1128 = vmul.f32 %v584, -0.5
  %v1129 = vmul.f32 %v585, -0.5
  %v1130 = vmul.f32 %v586, -0.5
  %v1131 = vmul.f32 %v587, -0.5
  %v1132 = vmul.f32 %v588, -0.5
  %v1133 = vmul.f32 %v589, -0.5
  %v1134 = vmul.f32 %v590, -0.5
  %v1135 = vmul.f32 %v591, -0.5
  %v1136 = vmul.f32 %v592, -0.5
  %v1137 = vmul.f32 %v593, -0.5
  %v1138 = vmul.f32 %v594, -0.5
  %v1139 = vmul.f32 %v595, -0.5
  %v1140 = vadd.f32 %v1108, 0.75
  %v1141 = vadd.f32 %v1109, 0.75
  %v1142 = vadd.f32 %v1110, 0.75
  %v1143 = vadd.f32 %v1111, 0.75
  %v1144 = vadd.f32 %v1112, 0.75
  %v1145 = vadd.f32 %v1113, 0.75
  %v1146 = vadd.f32 %v1114, 0.75
  %v1147 = vadd.f32 %v1115, 0.75
  %v1148 = vadd.f32 %v1116, 0.75
  %v1149 = vadd.f32 %v1117, 0.75
  %v1150 = vadd.f32 %v1118, 0.75
  %v1151 = vadd.f32 %v1119, 0.75
  %v1152 = vadd.f32 %v1120, 0.75
  %v1153 = vadd.f32 %v1121, 0.75
  %v1154 = vadd.f32 %v1122, 0.75
  %v1155 = vadd.f32 %v1123, 0.75
  %v1156 = vadd.f32 %v1124, 0.75
  %v1157 = vadd.f32 %v1125, 0.75
  %v1158 = vadd.f32 %v1126, 0.75
  %v1159 = vadd.f32 %v1127, 0.75
  %v1160 = vadd.f32 %v1128, 0.75
  %v1161 = vadd.f32 %v1129, 0.75
  %v1162 = vadd.f32 %v1130, 0.75
  %v1163 = vadd.f32 %v1131, 0.75
  %v1164 = vadd.f32 %v1132, 0.75
  %v1165 = vadd.f32 %v1133, 0.75
  %v1166 = vadd.f32 %v1134, 0.75
  %v1167 = vadd.f32 %v1135, 0.75
  %v1168 = vadd.f32 %v1136, 0.75
  %v1169 = vadd.f32 %v1137, 0.75
  %v1170 = vadd.f32 %v1138, 0.75
  %v1171 = vadd.f32 %v1139, 0.75
  %v1172 = vmul.f32 %v981, %v981
  %v1173 = vmul.f32 %v983, %v983
  %v1174 = vmul.f32 %v985, %v985
  %v1175 = vmul.f32 %v987, %v987
  %v1176 = vmul.f32 %v989, %v989
  %v1177 = vmul.f32 %v991, %v991
  %v1178 = vmul.f32 %v993, %v993
  %v1179 = vmul.f32 %v995, %v995
  %v1180 = vmul.f32 %v997, %v997
  %v1181 = vmul.f32 %v999, %v999
  %v1182 = vmul.f32 %v1001, %v1001
  %v1183 = vmul.f32 %v1003, %v1003
  %v1184 = vmul.f32 %v1005, %v1005
  %v1185 = vmul.f32 %v1007, %v1007
  %v1186 = vmul.f32 %v1009, %v1009
  %v1187 = vmul.f32 %v1011, %v1011
  %v1188 = vmul.f32 %v1013, %v1013
  %v1189 = vmul.f32 %v1015, %v1015
  %v1190 = vmul.f32 %v1017, %v1017
  %v1191 = vmul.f32 %v1019, %v1019
  %v1192 = vmul.f32 %v1021, %v1021
  %v1193 = vmul.f32 %v1023, %v1023
  %v1194 = vmul.f32 %v1025, %v1025
  %v1195 = vmul.f32 %v1027, %v1027
  %v1196 = vmul.f32 %v1029, %v1029
  %v1197 = vmul.f32 %v1031, %v1031
  %v1198 = vmul.f32 %v1033, %v1033
  %v1199 = vmul.f32 %v1035, %v1035
  %v1200 = vmul.f32 %v1037, %v1037
  %v1201 = vmul.f32 %v1039, %v1039
  %v1202 = vmul.f32 %v1041, %v1041
  %v1203 = vmul.f32 %v1043, %v1043
  %v1204 = vmul.f32 %v1140, %v1172
  %v1205 = vmul.f32 %v1141, %v1173
  %v1206 = vmul.f32 %v1142, %v1174
  %v1207 = vmul.f32 %v1143, %v1175
  %v1208 = vmul.f32 %v1144, %v1176
  %v1209 = vmul.f32 %v1145, %v1177
  %v1210 = vmul.f32 %v1146, %v1178
  %v1211 = vmul.f32 %v1147, %v1179
  %v1212 = vmul.f32 %v1148, %v1180
  %v1213 = vmul.f32 %v1149, %v1181
  %v1214 = vmul.f32 %v1150, %v1182
  %v1215 = vmul.f32 %v1151, %v1183
  %v1216 = vmul.f32 %v1152, %v1184
  %v1217 = vmul.f32 %v1153, %v1185
  %v1218 = vmul.f32 %v1154, %v1186
  %v1219 = vmul.f32 %v1155, %v1187
  %v1220 = vmul.f32 %v1156, %v1188
  %v1221 = vmul.f32 %v1157, %v1189
  %v1222 = vmul.f32 %v1158, %v1190
  %v1223 = vmul.f32 %v1159, %v1191
  %v1224 = vmul.f32 %v1160, %v1192
  %v1225 = vmul.f32 %v1161, %v1193
  %v1226 = vmul.f32 %v1162, %v1194
  %v1227 = vmul.f32 %v1163, %v1195
  %v1228 = vmul.f32 %v1164, %v1196
  %v1229 = vmul.f32 %v1165, %v1197
  %v1230 = vmul.f32 %v1166, %v1198
  %v1231 = vmul.f32 %v1167, %v1199
  %v1232 = vmul.f32 %v1168, %v1200
  %v1233 = vmul.f32 %v1169, %v1201
  %v1234 = vmul.f32 %v1170, %v1202
  %v1235 = vmul.f32 %v1171, %v1203
  %v1236 = vmul.f32 %v1204, %v1076
  %v1237 = vmul.f32 %v1205, %v1077
  %v1238 = vmul.f32 %v1206, %v1078
  %v1239 = vmul.f32 %v1207, %v1079
  %v1240 = vmul.f32 %v1208, %v1080
  %v1241 = vmul.f32 %v1209, %v1081
  %v1242 = vmul.f32 %v1210, %v1082
  %v1243 = vmul.f32 %v1211, %v1083
  %v1244 = vmul.f32 %v1212, %v1084
  %v1245 = vmul.f32 %v1213, %v1085
  %v1246 = vmul.f32 %v1214, %v1086
  %v1247 = vmul.f32 %v1215, %v1087
  %v1248 = vmul.f32 %v1216, %v1088
  %v1249 = vmul.f32 %v1217, %v1089
  %v1250 = vmul.f32 %v1218, %v1090
  %v1251 = vmul.f32 %v1219, %v1091
  %v1252 = vmul.f32 %v1220, %v1092
  %v1253 = vmul.f32 %v1221, %v1093
  %v1254 = vmul.f32 %v1222, %v1094
  %v1255 = vmul.f32 %v1223, %v1095
  %v1256 = vmul.f32 %v1224, %v1096
  %v1257 = vmul.f32 %v1225, %v1097
  %v1258 = vmul.f32 %v1226, %v1098
  %v1259 = vmul.f32 %v1227, %v1099
  %v1260 = vmul.f32 %v1228, %v1100
  %v1261 = vmul.f32 %v1229, %v1101
  %v1262 = vmul.f32 %v1230, %v1102
  %v1263 = vmul.f32 %v1231, %v1103
  %v1264 = vmul.f32 %v1232, %v1104
  %v1265 = vmul.f32 %v1233, %v1105
  %v1266 = vmul.f32 %v1234, %v1106
  %v1267 = vmul.f32 %v1235, %v1107
  %1269 = vset.pattern.permute.xlu0 0
  %1270 = vperm.xlu0 %1269, %v241
  %v1271 = vpop.permute.xlu0 %1270
  %1274 = vset.pattern.permute.xlu0 0
  %1275 = vperm.xlu0 %1274, %v242
  %v1276 = vpop.permute.xlu0 %1275
  %1279 = vset.pattern.permute.xlu0 0
  %1280 = vperm.xlu0 %1279, %v243
  %v1281 = vpop.permute.xlu0 %1280
  %1284 = vset.pattern.permute.xlu0 0
  %1285 = vperm.xlu0 %1284, %v244
  %v1286 = vpop.permute.xlu0 %1285
  %1289 = vset.pattern.permute.xlu0 0
  %1290 = vperm.xlu0 %1289, %v245
  %v1291 = vpop.permute.xlu0 %1290
  %1294 = vset.pattern.permute.xlu0 0
  %1295 = vperm.xlu0 %1294, %v246
  %v1296 = vpop.permute.xlu0 %1295
  %1299 = vset.pattern.permute.xlu0 0
  %1300 = vperm.xlu0 %1299, %v247
  %v1301 = vpop.permute.xlu0 %1300
  %1304 = vset.pattern.permute.xlu0 0
  %1305 = vperm.xlu0 %1304, %v248
  %v1306 = vpop.permute.xlu0 %1305
  %1309 = vset.pattern.permute.xlu0 0
  %1310 = vperm.xlu0 %1309, %v249
  %v1311 = vpop.permute.xlu0 %1310
  %1314 = vset.pattern.permute.xlu0 0
  %1315 = vperm.xlu0 %1314, %v250
  %v1316 = vpop.permute.xlu0 %1315
  %1319 = vset.pattern.permute.xlu0 0
  %1320 = vperm.xlu0 %1319, %v251
  %v1321 = vpop.permute.xlu0 %1320
  %1324 = vset.pattern.permute.xlu0 0
  %1325 = vperm.xlu0 %1324, %v252
  %v1326 = vpop.permute.xlu0 %1325
  %1329 = vset.pattern.permute.xlu0 0
  %1330 = vperm.xlu0 %1329, %v253
  %v1331 = vpop.permute.xlu0 %1330
  %1334 = vset.pattern.permute.xlu0 0
  %1335 = vperm.xlu0 %1334, %v254
  %v1336 = vpop.permute.xlu0 %1335
  %1339 = vset.pattern.permute.xlu0 0
  %1340 = vperm.xlu0 %1339, %v255
  %v1341 = vpop.permute.xlu0 %1340
  %1344 = vset.pattern.permute.xlu0 0
  %1345 = vperm.xlu0 %1344, %v256
  %v1346 = vpop.permute.xlu0 %1345
  %1349 = vset.pattern.permute.xlu0 0
  %1350 = vperm.xlu0 %1349, %v257
  %v1351 = vpop.permute.xlu0 %1350
  %1354 = vset.pattern.permute.xlu0 0
  %1355 = vperm.xlu0 %1354, %v258
  %v1356 = vpop.permute.xlu0 %1355
  %1359 = vset.pattern.permute.xlu0 0
  %1360 = vperm.xlu0 %1359, %v259
  %v1361 = vpop.permute.xlu0 %1360
  %1364 = vset.pattern.permute.xlu0 0
  %1365 = vperm.xlu0 %1364, %v260
  %v1366 = vpop.permute.xlu0 %1365
  %1369 = vset.pattern.permute.xlu0 0
  %1370 = vperm.xlu0 %1369, %v261
  %v1371 = vpop.permute.xlu0 %1370
  %1374 = vset.pattern.permute.xlu0 0
  %1375 = vperm.xlu0 %1374, %v262
  %v1376 = vpop.permute.xlu0 %1375
  %1379 = vset.pattern.permute.xlu0 0
  %1380 = vperm.xlu0 %1379, %v263
  %v1381 = vpop.permute.xlu0 %1380
  %1384 = vset.pattern.permute.xlu0 0
  %1385 = vperm.xlu0 %1384, %v264
  %v1386 = vpop.permute.xlu0 %1385
  %1389 = vset.pattern.permute.xlu0 0
  %1390 = vperm.xlu0 %1389, %v265
  %v1391 = vpop.permute.xlu0 %1390
  %1394 = vset.pattern.permute.xlu0 0
  %1395 = vperm.xlu0 %1394, %v266
  %v1396 = vpop.permute.xlu0 %1395
  %1399 = vset.pattern.permute.xlu0 0
  %1400 = vperm.xlu0 %1399, %v267
  %v1401 = vpop.permute.xlu0 %1400
  %1404 = vset.pattern.permute.xlu0 0
  %1405 = vperm.xlu0 %1404, %v268
  %v1406 = vpop.permute.xlu0 %1405
  %1409 = vset.pattern.permute.xlu0 0
  %1410 = vperm.xlu0 %1409, %v269
  %v1411 = vpop.permute.xlu0 %1410
  %1414 = vset.pattern.permute.xlu0 0
  %1415 = vperm.xlu0 %1414, %v270
  %v1416 = vpop.permute.xlu0 %1415
  %1419 = vset.pattern.permute.xlu0 0
  %1420 = vperm.xlu0 %1419, %v271
  %v1421 = vpop.permute.xlu0 %1420
  %1424 = vset.pattern.permute.xlu0 0
  %1425 = vperm.xlu0 %1424, %v272
  %v1426 = vpop.permute.xlu0 %1425
  %v1428 = vmul.f32 %v1236, %v1271
  %v1429 = vmul.f32 %v1237, %v1276
  %v1430 = vmul.f32 %v1238, %v1281
  %v1431 = vmul.f32 %v1239, %v1286
  %v1432 = vmul.f32 %v1240, %v1291
  %v1433 = vmul.f32 %v1241, %v1296
  %v1434 = vmul.f32 %v1242, %v1301
  %v1435 = vmul.f32 %v1243, %v1306
  %v1436 = vmul.f32 %v1244, %v1311
  %v1437 = vmul.f32 %v1245, %v1316
  %v1438 = vmul.f32 %v1246, %v1321
  %v1439 = vmul.f32 %v1247, %v1326
  %v1440 = vmul.f32 %v1248, %v1331
  %v1441 = vmul.f32 %v1249, %v1336
  %v1442 = vmul.f32 %v1250, %v1341
  %v1443 = vmul.f32 %v1251, %v1346
  %v1444 = vmul.f32 %v1252, %v1351
  %v1445 = vmul.f32 %v1253, %v1356
  %v1446 = vmul.f32 %v1254, %v1361
  %v1447 = vmul.f32 %v1255, %v1366
  %v1448 = vmul.f32 %v1256, %v1371
  %v1449 = vmul.f32 %v1257, %v1376
  %v1450 = vmul.f32 %v1258, %v1381
  %v1451 = vmul.f32 %v1259, %v1386
  %v1452 = vmul.f32 %v1260, %v1391
  %v1453 = vmul.f32 %v1261, %v1396
  %v1454 = vmul.f32 %v1262, %v1401
  %v1455 = vmul.f32 %v1263, %v1406
  %v1456 = vmul.f32 %v1264, %v1411
  %v1457 = vmul.f32 %v1265, %v1416
  %v1458 = vmul.f32 %v1266, %v1421
  %v1459 = vmul.f32 %v1267, %v1426
  %v1460 = vld [vmem:[#allocation3] sm:$0x1]
  %vm1461 = vcmask 64512
  %v1462 = vsel %vm1461, %v1428, 0.0
  %v1463 = vsel %vm1461, %v1429, 0.0
  %v1464 = vadd.f32 %v1462, %v1463
  %v1465 = vsel %vm1461, %v1430, 0.0
  %v1466 = vadd.f32 %v1464, %v1465
  %v1467 = vsel %vm1461, %v1431, 0.0
  %v1468 = vadd.f32 %v1466, %v1467
  %v1469 = vsel %vm1461, %v1432, 0.0
  %v1470 = vadd.f32 %v1468, %v1469
  %v1471 = vsel %vm1461, %v1433, 0.0
  %v1472 = vadd.f32 %v1470, %v1471
  %v1473 = vsel %vm1461, %v1434, 0.0
  %v1474 = vadd.f32 %v1472, %v1473
  %v1475 = vsel %vm1461, %v1435, 0.0
  %v1476 = vadd.f32 %v1474, %v1475
  %v1477 = vsel %vm1461, %v1436, 0.0
  %v1478 = vadd.f32 %v1476, %v1477
  %v1479 = vsel %vm1461, %v1437, 0.0
  %v1480 = vadd.f32 %v1478, %v1479
  %v1481 = vsel %vm1461, %v1438, 0.0
  %v1482 = vadd.f32 %v1480, %v1481
  %v1483 = vsel %vm1461, %v1439, 0.0
  %v1484 = vadd.f32 %v1482, %v1483
  %v1485 = vsel %vm1461, %v1440, 0.0
  %v1486 = vadd.f32 %v1484, %v1485
  %v1487 = vsel %vm1461, %v1441, 0.0
  %v1488 = vadd.f32 %v1486, %v1487
  %v1489 = vsel %vm1461, %v1442, 0.0
  %v1490 = vadd.f32 %v1488, %v1489
  %v1491 = vsel %vm1461, %v1443, 0.0
  %v1492 = vadd.f32 %v1490, %v1491
  %v1493 = vsel %vm1461, %v1444, 0.0
  %v1494 = vadd.f32 %v1492, %v1493
  %v1495 = vsel %vm1461, %v1445, 0.0
  %v1496 = vadd.f32 %v1494, %v1495
  %v1497 = vsel %vm1461, %v1446, 0.0
  %v1498 = vadd.f32 %v1496, %v1497
  %v1499 = vsel %vm1461, %v1447, 0.0
  %v1500 = vadd.f32 %v1498, %v1499
  %v1501 = vsel %vm1461, %v1448, 0.0
  %v1502 = vadd.f32 %v1500, %v1501
  %v1503 = vsel %vm1461, %v1449, 0.0
  %v1504 = vadd.f32 %v1502, %v1503
  %v1505 = vsel %vm1461, %v1450, 0.0
  %v1506 = vadd.f32 %v1504, %v1505
  %v1507 = vsel %vm1461, %v1451, 0.0
  %v1508 = vadd.f32 %v1506, %v1507
  %v1509 = vsel %vm1461, %v1452, 0.0
  %v1510 = vadd.f32 %v1508, %v1509
  %v1511 = vsel %vm1461, %v1453, 0.0
  %v1512 = vadd.f32 %v1510, %v1511
  %v1513 = vsel %vm1461, %v1454, 0.0
  %v1514 = vadd.f32 %v1512, %v1513
  %v1515 = vsel %vm1461, %v1455, 0.0
  %v1516 = vadd.f32 %v1514, %v1515
  %v1517 = vsel %vm1461, %v1456, 0.0
  %v1518 = vadd.f32 %v1516, %v1517
  %v1519 = vsel %vm1461, %v1457, 0.0
  %v1520 = vadd.f32 %v1518, %v1519
  %v1521 = vsel %vm1461, %v1458, 0.0
  %v1522 = vadd.f32 %v1520, %v1521
  %v1523 = vsel %vm1461, %v1459, 0.0
  %v1524 = vadd.f32 %v1522, %v1523
  %v1525 = vrot.slane %v1524, 4
  %v1526 = vadd.f32 %v1524, %v1525
  %v1527 = vrot.slane %v1526, 2
  %v1528 = vadd.f32 %v1526, %v1527
  %v1529 = vrot.slane %v1528, 1
  %v1530 = vadd.f32 %v1528, %v1529
  %v1531 = vadd.f32 %v1460, %v1530
  %vm1532 = vcmask 57344
  %1533 = vst.msk [vmem:[#allocation3] sm:$0x1] %vm1532, %v1531
  %v1534 = vld [vmem:[#allocation4] sm:$0x1]
  %vm1535 = vcmask 7168
  %v1536 = vsel %vm1535, %v337, 0.0
  %v1537 = vsel %vm1535, %v338, 0.0
  %v1538 = vadd.f32 %v1536, %v1537
  %v1539 = vsel %vm1535, %v339, 0.0
  %v1540 = vadd.f32 %v1538, %v1539
  %v1541 = vsel %vm1535, %v340, 0.0
  %v1542 = vadd.f32 %v1540, %v1541
  %v1543 = vsel %vm1535, %v341, 0.0
  %v1544 = vadd.f32 %v1542, %v1543
  %v1545 = vsel %vm1535, %v342, 0.0
  %v1546 = vadd.f32 %v1544, %v1545
  %v1547 = vsel %vm1535, %v343, 0.0
  %v1548 = vadd.f32 %v1546, %v1547
  %v1549 = vsel %vm1535, %v344, 0.0
  %v1550 = vadd.f32 %v1548, %v1549
  %v1551 = vsel %vm1535, %v345, 0.0
  %v1552 = vadd.f32 %v1550, %v1551
  %v1553 = vsel %vm1535, %v346, 0.0
  %v1554 = vadd.f32 %v1552, %v1553
  %v1555 = vsel %vm1535, %v347, 0.0
  %v1556 = vadd.f32 %v1554, %v1555
  %v1557 = vsel %vm1535, %v348, 0.0
  %v1558 = vadd.f32 %v1556, %v1557
  %v1559 = vsel %vm1535, %v349, 0.0
  %v1560 = vadd.f32 %v1558, %v1559
  %v1561 = vsel %vm1535, %v350, 0.0
  %v1562 = vadd.f32 %v1560, %v1561
  %v1563 = vsel %vm1535, %v351, 0.0
  %v1564 = vadd.f32 %v1562, %v1563
  %v1565 = vsel %vm1535, %v352, 0.0
  %v1566 = vadd.f32 %v1564, %v1565
  %v1567 = vsel %vm1535, %v353, 0.0
  %v1568 = vadd.f32 %v1566, %v1567
  %v1569 = vsel %vm1535, %v354, 0.0
  %v1570 = vadd.f32 %v1568, %v1569
  %v1571 = vsel %vm1535, %v355, 0.0
  %v1572 = vadd.f32 %v1570, %v1571
  %v1573 = vsel %vm1535, %v356, 0.0
  %v1574 = vadd.f32 %v1572, %v1573
  %v1575 = vsel %vm1535, %v357, 0.0
  %v1576 = vadd.f32 %v1574, %v1575
  %v1577 = vsel %vm1535, %v358, 0.0
  %v1578 = vadd.f32 %v1576, %v1577
  %v1579 = vsel %vm1535, %v359, 0.0
  %v1580 = vadd.f32 %v1578, %v1579
  %v1581 = vsel %vm1535, %v360, 0.0
  %v1582 = vadd.f32 %v1580, %v1581
  %v1583 = vsel %vm1535, %v361, 0.0
  %v1584 = vadd.f32 %v1582, %v1583
  %v1585 = vsel %vm1535, %v362, 0.0
  %v1586 = vadd.f32 %v1584, %v1585
  %v1587 = vsel %vm1535, %v363, 0.0
  %v1588 = vadd.f32 %v1586, %v1587
  %v1589 = vsel %vm1535, %v364, 0.0
  %v1590 = vadd.f32 %v1588, %v1589
  %v1591 = vsel %vm1535, %v365, 0.0
  %v1592 = vadd.f32 %v1590, %v1591
  %v1593 = vsel %vm1535, %v366, 0.0
  %v1594 = vadd.f32 %v1592, %v1593
  %v1595 = vsel %vm1535, %v367, 0.0
  %v1596 = vadd.f32 %v1594, %v1595
  %v1597 = vsel %vm1535, %v368, 0.0
  %v1598 = vadd.f32 %v1596, %v1597
  %v1599 = vrot.slane %v1598, 4
  %v1600 = vadd.f32 %v1598, %v1599
  %v1601 = vrot.slane %v1600, 2
  %v1602 = vadd.f32 %v1600, %v1601
  %v1603 = vrot.slane %v1602, 1
  %v1604 = vadd.f32 %v1602, %v1603
  %v1605 = vadd.f32 %v1534, %v1604
  %vm1606 = vcmask 0
  %1607 = vst.msk [vmem:[#allocation4] sm:$0x1] %vm1606, %v1605
  // Predicated region
  $region26: #{focal_loss_forward.1} parent=0 // pred_check
    %p1608 = pneg %p115
  $region27: #{focal_loss_forward.1} parent=0 // pred_check_branch
    %1610 = sbr.rel (%p1608) target = $region29
  $region28: #{focal_loss_forward.1} parent=0 // pred_region
    %v1611 = vld [vmem:[#allocation3] sm:$0x1]
    %v1612 = vsel %vm1532, %v1611, 0.0
    %1613 = vadd.xlane.f32.xlu0 %v1612
    %v1614 = vpop.xlane.xlu0 %1613
    %v1615 = vrot.slane %v1614, 4
    %v1616 = vadd.f32 %v1614, %v1615
    %v1617 = vrot.slane %v1616, 2
    %v1618 = vadd.f32 %v1616, %v1617
    %v1619 = vrot.slane %v1618, 1
    %v1620 = vadd.f32 %v1618, %v1619
    %s1621 = vtos %v1620
    %v1622 = vld [vmem:[#allocation2] sm:$0x1]
    %vm1623 = vcmask 1040384
    %v1624 = vsel %vm1623, %v1622, 0.0
    %1625 = vadd.xlane.f32.xlu0 %v1624
    %v1626 = vpop.xlane.xlu0 %1625
    %v1627 = vrot.slane %v1626, 4
    %v1628 = vadd.f32 %v1626, %v1627
    %v1629 = vrot.slane %v1628, 2
    %v1630 = vadd.f32 %v1628, %v1629
    %v1631 = vrot.slane %v1630, 1
    %v1632 = vadd.f32 %v1630, %v1631
    %s1633 = vtos %v1632
    %s1634 = sadd.f32 %s1621, %s1633
    %v1635 = vld [vmem:[#allocation4] sm:$0x1]
    %v1636 = vadd.f32 %v1635, 0.0
    %s1637 = vtos %v1636
    %v1638 = vlaneseq
    %v1639 = vshrl.u32 %v1638, 7
    %vm1640 = vcmp.eq.s32.totalorder %v1639, 0
    %vm1641 = vcmp.eq.s32.totalorder %v402, 0
    %vm1642 = vmand %vm1640, %vm1641
    %v1643 = vstv %s1634
    %v1644 = vsel %vm1642, %v1643, 0.0
    %vm1645 = vcmp.eq.s32.totalorder %v402, 1
    %vm1646 = vmand %vm1640, %vm1645
    %v1647 = vstv %s1637
    %v1648 = vsel %vm1646, %v1647, 0.0
    %v1649 = vadd.f32 %v1644, %v1648
    %1650 = vst [vmem:[%s5] sm:$0xff] %v1649
  $region29: #{focal_loss_forward.1} parent=0 // pred_fallthru
    _
  // Predicated region
  $region30: #{focal_loss_forward.1} parent=0 // pred_check
    _
  $region31: #{focal_loss_forward.1} parent=0 // pred_check_branch
    %1652 = sbr.rel (0) target = $region33
  $region32: #{focal_loss_forward.1} parent=0 // pred_region
    _
  $region33: #{focal_loss_forward.1} parent=0 // pred_fallthru
    _
  // Predicated region
  $region34: #{focal_loss_forward.1} parent=0 // pred_check
    _
  $region35: #{focal_loss_forward.1} parent=0 // pred_check_branch
    %1654 = sbr.rel (0) target = $region37
  $region36: #{focal_loss_forward.1} parent=0 // pred_region
    _
  $region37: #{focal_loss_forward.1} parent=0 // pred_fallthru
    _

</llo_original>
